<compile_context>
chip_gen: v5e
topology: v5e:2x2
jax: 0.10.0
libtpu: 0.0.40
codegen_flags: <defaults>
</compile_context>

<pallas_src>
import functools

import jax
import jax.numpy as jnp
import numpy as np
from jax.experimental import pallas as pl
from jax.experimental.pallas import tpu as pltpu

NEG_SLOPE = 0.01   # nn.LeakyReLU() default
BN_EPS = 1e-5      # nn.BatchNorm2d default


# ---------------------------------------------------------------------------
# In-kernel helpers
# ---------------------------------------------------------------------------
def _boundary_row_masks(nb, H, M):
    """(M,1) bool masks: True away from the first / last row of each of the nb images."""
    row = jax.lax.broadcasted_iota(jnp.int32, (M, 1), 0)
    not_top = row != 0
    not_bot = row != (H - 1)
    for i in range(1, nb):                       # static unroll, nb is small
        not_top = not_top & (row != i * H)
        not_bot = not_bot & (row != (i * H + H - 1))
    return not_top, not_bot


# ---------------------------------------------------------------------------
# Pallas kernels
# ---------------------------------------------------------------------------
def _conv1_kernel(x_ref, s_ref, b_ref, w_ref, bout_ref, h_ref, st_ref):
    """Fused BN1-affine + LeakyReLU + Conv2d(3x3,s=1,p=1) + BN2 batch-stat partials.

    x_ref   : (nb, H, W*Cin)      lane-dense input slab (nb images)
    s_ref   : (1, W*Cin)          BN1 scale per channel, tiled over W
    b_ref   : (1, W*Cin)          BN1 bias
    w_ref   : (3*W*Cin, W*Chid)   kh taps stacked along K (order: row h-1 | row h | row h+1)
    bout_ref: (1, W*Chid)         conv1 bias tiled over W
    h_ref   : (nb, H, W*Chid)     conv1 output slab (compute dtype)
    st_ref  : (1, 2, W*Chid)      [row-sum, row-sum-of-squares] partials for BN2 stats (f32)
    """
    nb, H, wc_in = x_ref.shape
    wc_out = h_ref.shape[2]
    M = nb * H
    cdt = w_ref.dtype                            # MXU compute dtype; VPU math stays f32

    xa = x_ref[...].reshape(M, wc_in) * s_ref[...] + b_ref[...]
    xa = jnp.where(xa >= 0, xa, NEG_SLOPE * xa)

    not_top, not_bot = _boundary_row_masks(nb, H, M)
    # row h of x_prev holds xa[h-1] (zero at the top of each image); x_next holds xa[h+1]
    x_prev = jnp.where(not_top, pltpu.roll(xa, 1, axis=0), 0.0)
    x_next = jnp.where(not_bot, pltpu.roll(xa, M - 1, axis=0), 0.0)

    # single MXU matmul, K = 3*W*Cin (kw taps + width padding folded into the banded weights)
    x3 = jnp.concatenate([x_prev, xa, x_next], axis=1).astype(cdt)
    h = jnp.dot(x3, w_ref[...], preferred_element_type=jnp.float32) + bout_ref[...]

    h_ref[...] = h.reshape(nb, H, wc_out).astype(h_ref.dtype)
    st_ref[0, 0:1, :] = jnp.sum(h, axis=0, keepdims=True)
    st_ref[0, 1:2, :] = jnp.sum(h * h, axis=0, keepdims=True)


def _convt_kernel(h_ref, x_ref, s_ref, b_ref, we_ref, wo_ref, bout_ref, o_ref):
    """Fused BN2-affine + LeakyReLU + merged (main ConvT + shortcut ConvT) + bias.

    Phase-decomposed ConvTranspose2d(k=3, s=2, p=1, output_padding=1):
      even output rows = [act(h) | x]                        @ We
      odd  output rows = [act(h) | x | act(h)_next | x_next] @ Wo
    (*_next = row h+1 of the same image, zero at the bottom boundary; the banded We/Wo matrices
     carry the 2x width upsampling, kw taps and width boundaries.)

    h_ref : (nb, H, W*Chid)             conv1 output slab (compute dtype, pre-BN2)
    x_ref : (nb, H, W*Cin)              raw input slab (shortcut path)
    we_ref: (W*(Chid+Cin), 2*W*Cout)    even-row banded weights  (main | shortcut stacked on K)
    wo_ref: (2*W*(Chid+Cin), 2*W*Cout)  odd-row banded weights
    bout_ref: (1, 2*W*Cout)             merged bias (b2 + bb) tiled over width
    o_ref : (nb, 2, H, 2*W*Cout)        [even-row slab, odd-row slab]
    """
    nb, H, wc_h = h_ref.shape
    wc_x = x_ref.shape[2]
    wc_o = o_ref.shape[3]
    M = nb * H
    cdt = we_ref.dtype

    ha = h_ref[...].reshape(M, wc_h).astype(jnp.float32) * s_ref[...] + b_ref[...]
    ha = jnp.where(ha >= 0, ha, NEG_SLOPE * ha)
    xs = x_ref[...].reshape(M, wc_x)

    _, not_bot = _boundary_row_masks(nb, H, M)
    ha_nxt = jnp.where(not_bot, pltpu.roll(ha, M - 1, axis=0), 0.0)
    xs_nxt = jnp.where(not_bot, pltpu.roll(xs, M - 1, axis=0), 0.0)

    bias = bout_ref[...]
    even_in = jnp.concatenate([ha, xs], axis=1).astype(cdt)
    odd_in = jnp.concatenate([ha, xs, ha_nxt, xs_nxt], axis=1).astype(cdt)
    even = jnp.dot(even_in, we_ref[...], preferred_element_type=jnp.float32) + bias
    odd = jnp.dot(odd_in, wo_ref[...], preferred_element_type=jnp.float32) + bias

    o_ref[:, 0, :, :] = even.reshape(nb, H, wc_o).astype(o_ref.dtype)
    o_ref[:, 1, :, :] = odd.reshape(nb, H, wc_o).astype(o_ref.dtype)


# ---------------------------------------------------------------------------
# pallas_call wrappers
# ---------------------------------------------------------------------------
def _bytes_of(arrays, extra=0):
    return int(sum(int(np.prod(a.shape)) * a.dtype.itemsize for a in arrays)) + int(extra)


def _pick_block_n(N, H, target_rows=256):
    """Largest divisor of N whose row-slab (block_n*H) roughly fills the MXU M dimension."""
    bn = max(1, min(N, max(1, target_rows // H)))
    while N % bn:
        bn -= 1
    return bn


def _conv1_call(x_slab, s_t, b_t, w_cat, bout_t, block_n, out_dtype):
    N, H, wc_in = x_slab.shape
    wc_out = w_cat.shape[-1]
    nblk = N // block_n
    flops = 2 * N * H * w_cat.shape[0] * wc_out
    bytes_acc = _bytes_of((x_slab, s_t, b_t, w_cat, bout_t),
                          extra=N * H * wc_out * jnp.dtype(out_dtype).itemsize
                                + nblk * 2 * wc_out * 4)
    return pl.pallas_call(
        _conv1_kernel,
        out_shape=(jax.ShapeDtypeStruct((N, H, wc_out), out_dtype),
                   jax.ShapeDtypeStruct((nblk, 2, wc_out), jnp.float32)),
        grid=(nblk,),
        in_specs=[
            pl.BlockSpec((block_n, H, wc_in), lambda n: (n, 0, 0)),
            pl.BlockSpec((1, wc_in), lambda n: (0, 0)),
            pl.BlockSpec((1, wc_in), lambda n: (0, 0)),
            pl.BlockSpec(w_cat.shape, lambda n: (0, 0)),
            pl.BlockSpec((1, wc_out), lambda n: (0, 0)),
        ],
        out_specs=(
            pl.BlockSpec((block_n, H, wc_out), lambda n: (n, 0, 0)),
            pl.BlockSpec((1, 2, wc_out), lambda n: (n, 0, 0)),
        ),
        compiler_params=pltpu.CompilerParams(
            dimension_semantics=("parallel",),
            vmem_limit_bytes=32 * 1024 * 1024),
        cost_estimate=pl.CostEstimate(flops=flops, transcendentals=0,
                                      bytes_accessed=bytes_acc),
    )(x_slab, s_t, b_t, w_cat, bout_t)


def _convt_call(h_slab, x_slab, s_t, b_t, we, wo, bout_t, block_n):
    N, H, wc_h = h_slab.shape
    wc_x = x_slab.shape[2]
    wc_o = we.shape[-1]                      # 2 * W * Cout
    nblk = N // block_n
    flops = 2 * N * H * (we.shape[0] + wo.shape[0]) * wc_o
    bytes_acc = _bytes_of((h_slab, x_slab, s_t, b_t, we, wo, bout_t),
                          extra=N * 2 * H * wc_o * 4)
    return pl.pallas_call(
        _convt_kernel,
        out_shape=jax.ShapeDtypeStruct((N, 2, H, wc_o), jnp.float32),
        grid=(nblk,),
        in_specs=[
            pl.BlockSpec((block_n, H, wc_h), lambda n: (n, 0, 0)),
            pl.BlockSpec((block_n, H, wc_x), lambda n: (n, 0, 0)),
            pl.BlockSpec((1, wc_h), lambda n: (0, 0)),
            pl.BlockSpec((1, wc_h), lambda n: (0, 0)),
            pl.BlockSpec(we.shape, lambda n: (0, 0)),
            pl.BlockSpec(wo.shape, lambda n: (0, 0)),
            pl.BlockSpec((1, wc_o), lambda n: (0, 0)),
        ],
        out_specs=pl.BlockSpec((block_n, 2, H, wc_o), lambda n: (n, 0, 0, 0)),
        compiler_params=pltpu.CompilerParams(
            dimension_semantics=("parallel",),
            vmem_limit_bytes=32 * 1024 * 1024),
        cost_estimate=pl.CostEstimate(flops=flops, transcendentals=0,
                                      bytes_accessed=bytes_acc),
    )(h_slab, x_slab, s_t, b_t, we, wo, bout_t)


# ---------------------------------------------------------------------------
# Setup-time weight preparation (banded matrices; built once with numpy)
# ---------------------------------------------------------------------------
def _band_conv3x3(w_hwio, W):
    """Fold kw taps + width zero-padding of a 3x3 'same' conv into per-kh banded matrices."""
    _, _, ci, co = w_hwio.shape
    w_np = np.asarray(w_hwio, np.float32)
    mats = np.zeros((3, W * ci, W * co), np.float32)
    for kh in range(3):
        for w_out in range(W):
            for kw in range(3):
                w_in = w_out + kw - 1
                if 0 <= w_in < W:
                    mats[kh, w_in * ci:(w_in + 1) * ci,
                         w_out * co:(w_out + 1) * co] = w_np[kh, kw]
    return mats


def _band_convt_s2(wf_hwio, W):
    """Phase-decomposed ConvTranspose(k=3, s=2, p=1, op=1) banded matrices.

    wf_hwio is the spatially flipped kernel (HWIO).  Returns (3, W*Ci, 2*W*Co):
      M[0]: even output rows (from input row r)
      M[1]: odd  output rows, contribution of input row r
      M[2]: odd  output rows, contribution of input row r+1
    """
    _, _, ci, co = wf_hwio.shape
    w_np = np.asarray(wf_hwio, np.float32)
    M = np.zeros((3, W * ci, 2 * W * co), np.float32)
    # (matrix index, output col parity, input col offset, kh, kw) of each ConvT tap
    taps = [(0, 0, 0, 1, 1), (0, 1, 0, 1, 0), (0, 1, 1, 1, 2),
            (1, 0, 0, 0, 1), (1, 1, 0, 0, 0), (1, 1, 1, 0, 2),
            (2, 0, 0, 2, 1), (2, 1, 0, 2, 0), (2, 1, 1, 2, 2)]
    for m_idx, pc, dw, kh, kw in taps:
        for c in range(W):
            w_in = c + dw
            if w_in >= W:   # right-edge zero of the (zero-inserted) upsampled grid
                continue
            ow = 2 * c + pc
            M[m_idx, w_in * ci:(w_in + 1) * ci, ow * co:(ow + 1) * co] = w_np[kh, kw]
    return M


# ---------------------------------------------------------------------------
# Forward pass (wrapper: layout plumbing + BN batch statistics only)
# ---------------------------------------------------------------------------
def _bn_fold(x_nhwc, gamma, beta):
    """Training-mode BatchNorm folded to per-channel scale/bias (biased variance)."""
    mean = jnp.mean(x_nhwc, axis=(0, 1, 2))
    var = jnp.mean((x_nhwc - mean) ** 2, axis=(0, 1, 2))
    scale = gamma / jnp.sqrt(var + BN_EPS)
    bias = beta - mean * scale
    return scale, bias


def _tile_lanes(v, reps):
    return jnp.tile(v, reps).reshape(1, -1).astype(jnp.float32)


def res_block_decoder(x_nchw, params, compute_dtype=jnp.float32, block_n=None):
    N, Cin, H, W = x_nchw.shape
    Chid = params["w1"].shape[-1]
    Cout = params["w2f"].shape[-1]

    # guard: banded weights were baked for a specific W (wrong W would be silently wrong)
    assert params["conv1_w"].shape == (3 * W * Cin, W * Chid), \
        "banded conv1 weights were built for a different W/Cin/Chid"
    assert params["convt_we"].shape == (W * (Chid + Cin), 2 * W * Cout), \
        "banded ConvT weights were built for a different W"
    assert params["convt_wo"].shape == (2 * W * (Chid + Cin), 2 * W * Cout)

    if block_n is None:
        block_n = _pick_block_n(N, H)
    assert N % block_n == 0

    x = jnp.transpose(x_nchw, (0, 2, 3, 1))            # NCHW -> NHWC
    x_slab = x.reshape(N, H, W * Cin)                  # lane-dense slab

    # ---- kernel 1: BN1 + LeakyReLU + conv1 + BN2-stat partials (fused) ----
    s1, b1a = _bn_fold(x, params["bn1_gamma"], params["bn1_beta"])
    h_slab, h_stats = _conv1_call(
        x_slab,
        _tile_lanes(s1, W), _tile_lanes(b1a, W),
        params["conv1_w"].astype(compute_dtype),
        _tile_lanes(params["b1"].reshape(-1), W),
        block_n, compute_dtype)

    # finish BN2 batch statistics from the tiny per-block partial sums (no extra pass over h)
    st = h_stats.reshape(-1, 2, W, Chid)
    tot = jnp.sum(st, axis=(0, 2))                      # (2, Chid)
    cnt = float(N * H * W)
    mean2 = tot[0] / cnt
    var2 = jnp.maximum(tot[1] / cnt - mean2 * mean2, 0.0)
    s2 = params["bn2_gamma"] / jnp.sqrt(var2 + BN_EPS)
    b2a = params["bn2_beta"] - mean2 * s2

    # ---- kernel 2: BN2 + LeakyReLU + merged main/shortcut ConvT + add (fused) ----
    out_slab = _convt_call(
        h_slab, x_slab,
        _tile_lanes(s2, W), _tile_lanes(b2a, W),
        params["convt_we"].astype(compute_dtype),
        params["convt_wo"].astype(compute_dtype),
        _tile_lanes(params["b2"].reshape(-1) + params["bb"].reshape(-1), 2 * W),
        block_n)

    # single transpose: (N,2,H,2W,Cout) -> (N,Cout,H,2,2W) -> (N,Cout,2H,2W)
    out = out_slab.reshape(N, 2, H, 2 * W, Cout)
    out = jnp.transpose(out, (0, 4, 2, 1, 3)).reshape(N, Cout, 2 * H, 2 * W)
    return out


# ---------------------------------------------------------------------------
# Pure-JAX reference (XLA convs) for correctness checking
# ---------------------------------------------------------------------------
def reference(x_nchw, params):
    x = jnp.transpose(x_nchw, (0, 2, 3, 1))
    dn = ("NHWC", "HWIO", "NHWC")

    def bn_act_ref(v, g, be):
        m = jnp.mean(v, axis=(0, 1, 2))
        va = jnp.mean((v - m) ** 2, axis=(0, 1, 2))
        y = (v - m) / jnp.sqrt(va + BN_EPS) * g + be
        return jnp.where(y >= 0, y, NEG_SLOPE * y)

    h = bn_act_ref(x, params["bn1_gamma"], params["bn1_beta"])
    h = jax.lax.conv_general_dilated(h, params["w1"], (1, 1), [(1, 1), (1, 1)],
                                     dimension_numbers=dn) + params["b1"][0]
    h = bn_act_ref(h, params["bn2_gamma"], params["bn2_beta"])
    main = jax.lax.conv_general_dilated(h, params["w2f"], (1, 1), [(1, 2), (1, 2)],
                                        lhs_dilation=(2, 2),
                                        dimension_numbers=dn) + params["b2"][0]
    short = jax.lax.conv_general_dilated(x, params["wbf"], (1, 1), [(1, 2), (1, 2)],
                                         lhs_dilation=(2, 2),
                                         dimension_numbers=dn) + params["bb"][0]
    return jnp.transpose(main + short, (0, 3, 1, 2))


# ---------------------------------------------------------------------------
def make_params(key, cin, chid, cout, W):
    ks = jax.random.split(key, 6)
    # PyTorch-shaped weights, converted to HWIO (ConvT kernels spatially flipped).
    w1_pt = 0.1 * jax.random.normal(ks[0], (chid, cin, 3, 3), jnp.float32)   # Conv2d (out,in,kh,kw)
    w2_pt = 0.1 * jax.random.normal(ks[1], (chid, cout, 3, 3), jnp.float32)  # ConvT  (in,out,kh,kw)
    wb_pt = 0.1 * jax.random.normal(ks[2], (cin, cout, 3, 3), jnp.float32)   # ConvT  (in,out,kh,kw)
    w1 = jnp.transpose(w1_pt, (2, 3, 1, 0))                                  # HWIO
    w2f = jnp.transpose(w2_pt[:, :, ::-1, ::-1], (2, 3, 0, 1))               # flipped HWIO
    wbf = jnp.transpose(wb_pt[:, :, ::-1, ::-1], (2, 3, 0, 1))               # flipped HWIO

    # banded matrices with kh taps / main+shortcut stacked along K (one big MXU K dim)
    band1 = _band_conv3x3(w1, W)                    # (3, W*Cin, W*Chid)
    mh = _band_convt_s2(w2f, W)                     # (3, W*Chid, 2*W*Cout)
    mx = _band_convt_s2(wbf, W)                     # (3, W*Cin,  2*W*Cout)
    conv1_w = np.concatenate([band1[0], band1[1], band1[2]], axis=0)
    convt_we = np.concatenate([mh[0], mx[0]], axis=0)
    convt_wo = np.concatenate([mh[1], mx[1], mh[2], mx[2]], axis=0)

    return {
        "w1": w1,
        "b1": 0.1 * jax.random.normal(ks[3], (1, chid), jnp.float32),
        "w2f": w2f,
        "b2": 0.1 * jax.random.normal(ks[4], (1, cout), jnp.float32),
        "wbf": wbf,
        "bb": 0.1 * jax.random.normal(ks[5], (1, cout), jnp.float32),
        "bn1_gamma": jnp.ones((cin,), jnp.float32),   # PyTorch BN default init
        "bn1_beta": jnp.zeros((cin,), jnp.float32),
        "bn2_gamma": jnp.ones((chid,), jnp.float32),
        "bn2_beta": jnp.zeros((chid,), jnp.float32),
        "conv1_w": jnp.asarray(conv1_w),
        "convt_we": jnp.asarray(convt_we),
        "convt_wo": jnp.asarray(convt_wo),
    }
    # TODO(synk): spectral_norm is a no-op here (use_spect=False); BatchNorm running-stat
    # updates (module state mutation) are not reproduced — pure forward only.


if __name__ == "__main__":
    N, Cin, H, W = 2, 4, 16, 16
    Cout = 8
    Chid = Cout  # hidden_nc defaults to output_nc

    key = jax.random.PRNGKey(0)
    kx, kp = jax.random.split(key)
    x = jax.random.normal(kx, (N, Cin, H, W), jnp.float32)
    params = make_params(kp, Cin, Chid, Cout, W)

    fwd_f32 = jax.jit(functools.partial(res_block_decoder, compute_dtype=jnp.float32))
    fwd_bf16 = jax.jit(functools.partial(res_block_decoder, compute_dtype=jnp.bfloat16))

    out = jax.block_until_ready(fwd_f32(x, params))
    ref = jax.block_until_ready(reference(x, params))

    assert out.shape == (N, Cout, 2 * H, 2 * W), out.shape
    np.testing.assert_allclose(np.asarray(out), np.asarray(ref), rtol=1e-3, atol=1e-3)

    # bf16 fast path (v6e/v7x): bf16 MXU inputs and bf16 intermediate, f32 accumulate & VPU math.
    out_bf16 = jax.block_until_ready(fwd_bf16(x, params))
    np.testing.assert_allclose(np.asarray(out_bf16), np.asarray(ref), rtol=5e-2, atol=5e-2)

    print("KERNEL_OK")
</pallas_src>

<mosaic_0001>
module attributes {stable_mosaic.version = 11 : i64} {
  func.func @_conv1_kernel(%arg0: i32, %arg1: memref<2x16x64xf32, #tpu.memory_space<vmem>>, %arg2: memref<1x64xf32, #tpu.memory_space<vmem>>, %arg3: memref<1x64xf32, #tpu.memory_space<vmem>>, %arg4: memref<192x128xf32, #tpu.memory_space<vmem>>, %arg5: memref<1x128xf32, #tpu.memory_space<vmem>>, %arg6: memref<2x16x128xf32, #tpu.memory_space<vmem>>, %arg7: memref<1x2x128xf32, #tpu.memory_space<vmem>>) attributes {dimension_semantics = [#tpu.dimension_semantics<parallel>], iteration_bounds = array<i64: 1>, scalar_prefetch = 0 : i64, scratch_operands = 0 : i64, tpu.core_type = #tpu.core_type<tc>, window_params = [{transform_indices = @transform_0, window_bounds = array<i64: 2, 16, 64>}, {pipeline_mode = #tpu.pipeline_mode<synchronous>, transform_indices = @transform_1, window_bounds = array<i64: 1, 64>}, {pipeline_mode = #tpu.pipeline_mode<synchronous>, transform_indices = @transform_2, window_bounds = array<i64: 1, 64>}, {pipeline_mode = #tpu.pipeline_mode<synchronous>, transform_indices = @transform_3, window_bounds = array<i64: 192, 128>}, {pipeline_mode = #tpu.pipeline_mode<synchronous>, transform_indices = @transform_4, window_bounds = array<i64: 1, 128>}, {transform_indices = @transform_5, window_bounds = array<i64: 2, 16, 128>}, {transform_indices = @transform_6, window_bounds = array<i64: 1, 2, 128>}]} {
    %c0 = arith.constant 0 : index
    %c0_0 = arith.constant 0 : index
    %c0_1 = arith.constant 0 : index
    %0 = vector.load %arg1[%c0, %c0_0, %c0_1] : memref<2x16x64xf32, #tpu.memory_space<vmem>>, vector<2x16x64xf32>
    %1 = vector.shape_cast %0 : vector<2x16x64xf32> to vector<32x64xf32>
    %c0_2 = arith.constant 0 : index
    %c0_3 = arith.constant 0 : index
    %2 = vector.load %arg2[%c0_2, %c0_3] : memref<1x64xf32, #tpu.memory_space<vmem>>, vector<1x64xf32>
    %3 = vector.broadcast %2 : vector<1x64xf32> to vector<32x64xf32>
    %4 = arith.mulf %1, %3 : vector<32x64xf32>
    %c0_4 = arith.constant 0 : index
    %c0_5 = arith.constant 0 : index
    %5 = vector.load %arg3[%c0_4, %c0_5] : memref<1x64xf32, #tpu.memory_space<vmem>>, vector<1x64xf32>
    %6 = vector.broadcast %5 : vector<1x64xf32> to vector<32x64xf32>
    %7 = arith.addf %4, %6 : vector<32x64xf32>
    %cst = arith.constant 0.000000e+00 : f32
    %8 = vector.broadcast %cst : f32 to vector<32x64xf32>
    %9 = arith.cmpf oge, %7, %8 : vector<32x64xf32>
    %cst_6 = arith.constant 0.00999999977 : f32
    %10 = vector.broadcast %cst_6 : f32 to vector<32x64xf32>
    %11 = arith.mulf %10, %7 : vector<32x64xf32>
    %12 = arith.select %9, %7, %11 : vector<32x64xi1>, vector<32x64xf32>
    %13 = tpu.iota {dimensions = array<i32: 0>} : vector<32x1xi32>
    %c0_i32 = arith.constant 0 : i32
    %14 = vector.broadcast %c0_i32 : i32 to vector<32x1xi32>
    %15 = arith.cmpi ne, %13, %14 : vector<32x1xi32>
    %c15_i32 = arith.constant 15 : i32
    %16 = vector.broadcast %c15_i32 : i32 to vector<32x1xi32>
    %17 = arith.cmpi ne, %13, %16 : vector<32x1xi32>
    %c16_i32 = arith.constant 16 : i32
    %18 = vector.broadcast %c16_i32 : i32 to vector<32x1xi32>
    %19 = arith.cmpi ne, %13, %18 : vector<32x1xi32>
    %20 = arith.andi %15, %19 : vector<32x1xi1>
    %c31_i32 = arith.constant 31 : i32
    %21 = vector.broadcast %c31_i32 : i32 to vector<32x1xi32>
    %22 = arith.cmpi ne, %13, %21 : vector<32x1xi32>
    %23 = arith.andi %17, %22 : vector<32x1xi1>
    %c1_i32 = arith.constant 1 : i32
    %24 = tpu.dynamic_rotate %12 by %c1_i32 dim 0 : vector<32x64xf32>, i32 -> vector<32x64xf32>
    %cst_7 = arith.constant 0.000000e+00 : f32
    %25 = vector.shape_cast %20 : vector<32x1xi1> to vector<32x1xi1>
    %26 = vector.broadcast %25 : vector<32x1xi1> to vector<32x64xi1>
    %27 = vector.broadcast %cst_7 : f32 to vector<32x64xf32>
    %28 = arith.select %26, %24, %27 : vector<32x64xi1>, vector<32x64xf32>
    %c31_i32_8 = arith.constant 31 : i32
    %29 = tpu.dynamic_rotate %12 by %c31_i32_8 dim 0 : vector<32x64xf32>, i32 -> vector<32x64xf32>
    %cst_9 = arith.constant 0.000000e+00 : f32
    %30 = vector.shape_cast %23 : vector<32x1xi1> to vector<32x1xi1>
    %31 = vector.broadcast %30 : vector<32x1xi1> to vector<32x64xi1>
    %32 = vector.broadcast %cst_9 : f32 to vector<32x64xf32>
    %33 = arith.select %31, %29, %32 : vector<32x64xi1>, vector<32x64xf32>
    %34 = tpu.concatenate %28, %12, %33 in 1 : vector<32x64xf32>, vector<32x64xf32>, vector<32x64xf32> -> vector<32x192xf32>
    %c0_10 = arith.constant 0 : index
    %c0_11 = arith.constant 0 : index
    %35 = vector.load %arg4[%c0_10, %c0_11] : memref<192x128xf32, #tpu.memory_space<vmem>>, vector<192x128xf32>
    %cst_12 = arith.constant dense<0.000000e+00> : vector<32x128xf32>
    %36 = tpu.matmul %34, %35, %cst_12 {dimension_numbers = #tpu.dot_dimension_numbers<[1], [0], [0], [1], [0, 0, 1, 1], [], []>} : vector<32x192xf32>, vector<192x128xf32>, vector<32x128xf32> -> vector<32x128xf32>
    %c0_13 = arith.constant 0 : index
    %c0_14 = arith.constant 0 : index
    %37 = vector.load %arg5[%c0_13, %c0_14] : memref<1x128xf32, #tpu.memory_space<vmem>>, vector<1x128xf32>
    %38 = vector.broadcast %37 : vector<1x128xf32> to vector<32x128xf32>
    %39 = arith.addf %36, %38 : vector<32x128xf32>
    %40 = vector.shape_cast %39 : vector<32x128xf32> to vector<2x16x128xf32>
    %c0_15 = arith.constant 0 : index
    %c0_16 = arith.constant 0 : index
    %c0_17 = arith.constant 0 : index
    %41 = vector.load %arg6[%c0_15, %c0_16, %c0_17] : memref<2x16x128xf32, #tpu.memory_space<vmem>>, vector<2x16x128xf32>
    tpu.vector_store %arg6[%c0_15, %c0_16, %c0_17], %40 {strides = array<i32>} : memref<2x16x128xf32, #tpu.memory_space<vmem>>, vector<2x16x128xf32>,
    %cst_18 = arith.constant dense<0.000000e+00> : vector<128xf32>
    %42 = vector.multi_reduction <add>, %39, %cst_18 [0] : vector<32x128xf32> to vector<128xf32>
    %43 = vector.shape_cast %42 : vector<128xf32> to vector<1x128xf32>
    %c0_19 = arith.constant 0 : index
    %c0_20 = arith.constant 0 : index
    %c0_21 = arith.constant 0 : index
    %44 = vector.load %arg7[%c0_19, %c0_20, %c0_21] : memref<1x2x128xf32, #tpu.memory_space<vmem>>, vector<1x1x128xf32>
    %45 = vector.shape_cast %44 : vector<1x1x128xf32> to vector<1x128xf32>
    %46 = vector.shape_cast %43 : vector<1x128xf32> to vector<1x1x128xf32>
    tpu.vector_store %arg7[%c0_19, %c0_20, %c0_21], %46 {strides = array<i32>} : memref<1x2x128xf32, #tpu.memory_space<vmem>>, vector<1x1x128xf32>,
    %47 = arith.mulf %39, %39 : vector<32x128xf32>
    %cst_22 = arith.constant dense<0.000000e+00> : vector<128xf32>
    %48 = vector.multi_reduction <add>, %47, %cst_22 [0] : vector<32x128xf32> to vector<128xf32>
    %49 = vector.shape_cast %48 : vector<128xf32> to vector<1x128xf32>
    %c0_23 = arith.constant 0 : index
    %c1 = arith.constant 1 : index
    %c0_24 = arith.constant 0 : index
    %50 = vector.load %arg7[%c0_23, %c1, %c0_24] : memref<1x2x128xf32, #tpu.memory_space<vmem>>, vector<1x1x128xf32>
    %51 = vector.shape_cast %50 : vector<1x1x128xf32> to vector<1x128xf32>
    %52 = vector.shape_cast %49 : vector<1x128xf32> to vector<1x1x128xf32>
    tpu.vector_store %arg7[%c0_23, %c1, %c0_24], %52 {strides = array<i32>} : memref<1x2x128xf32, #tpu.memory_space<vmem>>, vector<1x1x128xf32>,
    return
  }
  func.func @transform_0(%arg0: i32) -> (i32, i32, i32) {
    %c0_i32 = arith.constant 0 : i32
    %c0_i32_0 = arith.constant 0 : i32
    %c0_i32_1 = arith.constant 0 : i32
    return %arg0, %c0_i32, %c0_i32_0 : i32, i32, i32
  }
  func.func @transform_1(%arg0: i32) -> (i32, i32) {
    %c0_i32 = arith.constant 0 : i32
    %c0_i32_0 = arith.constant 0 : i32
    %c0_i32_1 = arith.constant 0 : i32
    return %c0_i32, %c0_i32_0 : i32, i32
  }
  func.func @transform_2(%arg0: i32) -> (i32, i32) {
    %c0_i32 = arith.constant 0 : i32
    %c0_i32_0 = arith.constant 0 : i32
    %c0_i32_1 = arith.constant 0 : i32
    return %c0_i32, %c0_i32_0 : i32, i32
  }
  func.func @transform_3(%arg0: i32) -> (i32, i32) {
    %c0_i32 = arith.constant 0 : i32
    %c0_i32_0 = arith.constant 0 : i32
    %c0_i32_1 = arith.constant 0 : i32
    return %c0_i32, %c0_i32_0 : i32, i32
  }
  func.func @transform_4(%arg0: i32) -> (i32, i32) {
    %c0_i32 = arith.constant 0 : i32
    %c0_i32_0 = arith.constant 0 : i32
    %c0_i32_1 = arith.constant 0 : i32
    return %c0_i32, %c0_i32_0 : i32, i32
  }
  func.func @transform_5(%arg0: i32) -> (i32, i32, i32) {
    %c0_i32 = arith.constant 0 : i32
    %c0_i32_0 = arith.constant 0 : i32
    %c0_i32_1 = arith.constant 0 : i32
    return %arg0, %c0_i32, %c0_i32_0 : i32, i32, i32
  }
  func.func @transform_6(%arg0: i32) -> (i32, i32, i32) {
    %c0_i32 = arith.constant 0 : i32
    %c0_i32_0 = arith.constant 0 : i32
    %c0_i32_1 = arith.constant 0 : i32
    return %arg0, %c0_i32, %c0_i32_0 : i32, i32, i32
  }
}

module attributes {stable_mosaic.version = 11 : i64} {
  func.func @_convt_kernel(%arg0: i32, %arg1: memref<2x16x128xf32, #tpu.memory_space<vmem>>, %arg2: memref<2x16x64xf32, #tpu.memory_space<vmem>>, %arg3: memref<1x128xf32, #tpu.memory_space<vmem>>, %arg4: memref<1x128xf32, #tpu.memory_space<vmem>>, %arg5: memref<192x256xf32, #tpu.memory_space<vmem>>, %arg6: memref<384x256xf32, #tpu.memory_space<vmem>>, %arg7: memref<1x256xf32, #tpu.memory_space<vmem>>, %arg8: memref<2x2x16x256xf32, #tpu.memory_space<vmem>>) attributes {dimension_semantics = [#tpu.dimension_semantics<parallel>], iteration_bounds = array<i64: 1>, scalar_prefetch = 0 : i64, scratch_operands = 0 : i64, tpu.core_type = #tpu.core_type<tc>, window_params = [{transform_indices = @transform_0, window_bounds = array<i64: 2, 16, 128>}, {transform_indices = @transform_1, window_bounds = array<i64: 2, 16, 64>}, {pipeline_mode = #tpu.pipeline_mode<synchronous>, transform_indices = @transform_2, window_bounds = array<i64: 1, 128>}, {pipeline_mode = #tpu.pipeline_mode<synchronous>, transform_indices = @transform_3, window_bounds = array<i64: 1, 128>}, {pipeline_mode = #tpu.pipeline_mode<synchronous>, transform_indices = @transform_4, window_bounds = array<i64: 192, 256>}, {pipeline_mode = #tpu.pipeline_mode<synchronous>, transform_indices = @transform_5, window_bounds = array<i64: 384, 256>}, {pipeline_mode = #tpu.pipeline_mode<synchronous>, transform_indices = @transform_6, window_bounds = array<i64: 1, 256>}, {transform_indices = @transform_7, window_bounds = array<i64: 2, 2, 16, 256>}]} {
    %c0 = arith.constant 0 : index
    %c0_0 = arith.constant 0 : index
    %c0_1 = arith.constant 0 : index
    %0 = vector.load %arg1[%c0, %c0_0, %c0_1] : memref<2x16x128xf32, #tpu.memory_space<vmem>>, vector<2x16x128xf32>
    %1 = vector.shape_cast %0 : vector<2x16x128xf32> to vector<32x128xf32>
    %c0_2 = arith.constant 0 : index
    %c0_3 = arith.constant 0 : index
    %2 = vector.load %arg3[%c0_2, %c0_3] : memref<1x128xf32, #tpu.memory_space<vmem>>, vector<1x128xf32>
    %3 = vector.broadcast %2 : vector<1x128xf32> to vector<32x128xf32>
    %4 = arith.mulf %1, %3 : vector<32x128xf32>
    %c0_4 = arith.constant 0 : index
    %c0_5 = arith.constant 0 : index
    %5 = vector.load %arg4[%c0_4, %c0_5] : memref<1x128xf32, #tpu.memory_space<vmem>>, vector<1x128xf32>
    %6 = vector.broadcast %5 : vector<1x128xf32> to vector<32x128xf32>
    %7 = arith.addf %4, %6 : vector<32x128xf32>
    %cst = arith.constant 0.000000e+00 : f32
    %8 = vector.broadcast %cst : f32 to vector<32x128xf32>
    %9 = arith.cmpf oge, %7, %8 : vector<32x128xf32>
    %cst_6 = arith.constant 0.00999999977 : f32
    %10 = vector.broadcast %cst_6 : f32 to vector<32x128xf32>
    %11 = arith.mulf %10, %7 : vector<32x128xf32>
    %12 = arith.select %9, %7, %11 : vector<32x128xi1>, vector<32x128xf32>
    %c0_7 = arith.constant 0 : index
    %c0_8 = arith.constant 0 : index
    %c0_9 = arith.constant 0 : index
    %13 = vector.load %arg2[%c0_7, %c0_8, %c0_9] : memref<2x16x64xf32, #tpu.memory_space<vmem>>, vector<2x16x64xf32>
    %14 = vector.shape_cast %13 : vector<2x16x64xf32> to vector<32x64xf32>
    %15 = tpu.iota {dimensions = array<i32: 0>} : vector<32x1xi32>
    %c15_i32 = arith.constant 15 : i32
    %16 = vector.broadcast %c15_i32 : i32 to vector<32x1xi32>
    %17 = arith.cmpi ne, %15, %16 : vector<32x1xi32>
    %c31_i32 = arith.constant 31 : i32
    %18 = vector.broadcast %c31_i32 : i32 to vector<32x1xi32>
    %19 = arith.cmpi ne, %15, %18 : vector<32x1xi32>
    %20 = arith.andi %17, %19 : vector<32x1xi1>
    %c31_i32_10 = arith.constant 31 : i32
    %21 = tpu.dynamic_rotate %12 by %c31_i32_10 dim 0 : vector<32x128xf32>, i32 -> vector<32x128xf32>
    %cst_11 = arith.constant 0.000000e+00 : f32
    %22 = vector.shape_cast %20 : vector<32x1xi1> to vector<32x1xi1>
    %23 = vector.broadcast %22 : vector<32x1xi1> to vector<32x128xi1>
    %24 = vector.broadcast %cst_11 : f32 to vector<32x128xf32>
    %25 = arith.select %23, %21, %24 : vector<32x128xi1>, vector<32x128xf32>
    %c31_i32_12 = arith.constant 31 : i32
    %26 = tpu.dynamic_rotate %14 by %c31_i32_12 dim 0 : vector<32x64xf32>, i32 -> vector<32x64xf32>
    %cst_13 = arith.constant 0.000000e+00 : f32
    %27 = vector.shape_cast %20 : vector<32x1xi1> to vector<32x1xi1>
    %28 = vector.broadcast %27 : vector<32x1xi1> to vector<32x64xi1>
    %29 = vector.broadcast %cst_13 : f32 to vector<32x64xf32>
    %30 = arith.select %28, %26, %29 : vector<32x64xi1>, vector<32x64xf32>
    %c0_14 = arith.constant 0 : index
    %c0_15 = arith.constant 0 : index
    %31 = vector.load %arg7[%c0_14, %c0_15] : memref<1x256xf32, #tpu.memory_space<vmem>>, vector<1x256xf32>
    %32 = tpu.concatenate %12, %14 in 1 : vector<32x128xf32>, vector<32x64xf32> -> vector<32x192xf32>
    %33 = tpu.concatenate %12, %14, %25, %30 in 1 : vector<32x128xf32>, vector<32x64xf32>, vector<32x128xf32>, vector<32x64xf32> -> vector<32x384xf32>
    %c0_16 = arith.constant 0 : index
    %c0_17 = arith.constant 0 : index
    %34 = vector.load %arg5[%c0_16, %c0_17] : memref<192x256xf32, #tpu.memory_space<vmem>>, vector<192x256xf32>
    %cst_18 = arith.constant dense<0.000000e+00> : vector<32x256xf32>
    %35 = tpu.matmul %32, %34, %cst_18 {dimension_numbers = #tpu.dot_dimension_numbers<[1], [0], [0], [1], [0, 0, 1, 1], [], []>} : vector<32x192xf32>, vector<192x256xf32>, vector<32x256xf32> -> vector<32x256xf32>
    %36 = vector.broadcast %31 : vector<1x256xf32> to vector<32x256xf32>
    %37 = arith.addf %35, %36 : vector<32x256xf32>
    %c0_19 = arith.constant 0 : index
    %c0_20 = arith.constant 0 : index
    %38 = vector.load %arg6[%c0_19, %c0_20] : memref<384x256xf32, #tpu.memory_space<vmem>>, vector<384x256xf32>
    %cst_21 = arith.constant dense<0.000000e+00> : vector<32x256xf32>
    %39 = tpu.matmul %33, %38, %cst_21 {dimension_numbers = #tpu.dot_dimension_numbers<[1], [0], [0], [1], [0, 0, 1, 1], [], []>} : vector<32x384xf32>, vector<384x256xf32>, vector<32x256xf32> -> vector<32x256xf32>
    %40 = vector.broadcast %31 : vector<1x256xf32> to vector<32x256xf32>
    %41 = arith.addf %39, %40 : vector<32x256xf32>
    %42 = vector.shape_cast %37 : vector<32x256xf32> to vector<2x16x256xf32>
    %c0_22 = arith.constant 0 : index
    %c0_23 = arith.constant 0 : index
    %c0_24 = arith.constant 0 : index
    %c0_25 = arith.constant 0 : index
    %43 = vector.load %arg8[%c0_22, %c0_23, %c0_24, %c0_25] : memref<2x2x16x256xf32, #tpu.memory_space<vmem>>, vector<2x1x16x256xf32>
    %44 = vector.shape_cast %43 : vector<2x1x16x256xf32> to vector<2x16x256xf32>
    %45 = vector.shape_cast %42 : vector<2x16x256xf32> to vector<2x1x16x256xf32>
    tpu.vector_store %arg8[%c0_22, %c0_23, %c0_24, %c0_25], %45 {strides = array<i32>} : memref<2x2x16x256xf32, #tpu.memory_space<vmem>>, vector<2x1x16x256xf32>,
    %46 = vector.shape_cast %41 : vector<32x256xf32> to vector<2x16x256xf32>
    %c0_26 = arith.constant 0 : index
    %c1 = arith.constant 1 : index
    %c0_27 = arith.constant 0 : index
    %c0_28 = arith.constant 0 : index
    %47 = vector.load %arg8[%c0_26, %c1, %c0_27, %c0_28] : memref<2x2x16x256xf32, #tpu.memory_space<vmem>>, vector<2x1x16x256xf32>
    %48 = vector.shape_cast %47 : vector<2x1x16x256xf32> to vector<2x16x256xf32>
    %49 = vector.shape_cast %46 : vector<2x16x256xf32> to vector<2x1x16x256xf32>
    tpu.vector_store %arg8[%c0_26, %c1, %c0_27, %c0_28], %49 {strides = array<i32>} : memref<2x2x16x256xf32, #tpu.memory_space<vmem>>, vector<2x1x16x256xf32>,
    return
  }
  func.func @transform_0(%arg0: i32) -> (i32, i32, i32) {
    %c0_i32 = arith.constant 0 : i32
    %c0_i32_0 = arith.constant 0 : i32
    %c0_i32_1 = arith.constant 0 : i32
    return %arg0, %c0_i32, %c0_i32_0 : i32, i32, i32
  }
  func.func @transform_1(%arg0: i32) -> (i32, i32, i32) {
    %c0_i32 = arith.constant 0 : i32
    %c0_i32_0 = arith.constant 0 : i32
    %c0_i32_1 = arith.constant 0 : i32
    return %arg0, %c0_i32, %c0_i32_0 : i32, i32, i32
  }
  func.func @transform_2(%arg0: i32) -> (i32, i32) {
    %c0_i32 = arith.constant 0 : i32
    %c0_i32_0 = arith.constant 0 : i32
    %c0_i32_1 = arith.constant 0 : i32
    return %c0_i32, %c0_i32_0 : i32, i32
  }
  func.func @transform_3(%arg0: i32) -> (i32, i32) {
    %c0_i32 = arith.constant 0 : i32
    %c0_i32_0 = arith.constant 0 : i32
    %c0_i32_1 = arith.constant 0 : i32
    return %c0_i32, %c0_i32_0 : i32, i32
  }
  func.func @transform_4(%arg0: i32) -> (i32, i32) {
    %c0_i32 = arith.constant 0 : i32
    %c0_i32_0 = arith.constant 0 : i32
    %c0_i32_1 = arith.constant 0 : i32
    return %c0_i32, %c0_i32_0 : i32, i32
  }
  func.func @transform_5(%arg0: i32) -> (i32, i32) {
    %c0_i32 = arith.constant 0 : i32
    %c0_i32_0 = arith.constant 0 : i32
    %c0_i32_1 = arith.constant 0 : i32
    return %c0_i32, %c0_i32_0 : i32, i32
  }
  func.func @transform_6(%arg0: i32) -> (i32, i32) {
    %c0_i32 = arith.constant 0 : i32
    %c0_i32_0 = arith.constant 0 : i32
    %c0_i32_1 = arith.constant 0 : i32
    return %c0_i32, %c0_i32_0 : i32, i32
  }
  func.func @transform_7(%arg0: i32) -> (i32, i32, i32, i32) {
    %c0_i32 = arith.constant 0 : i32
    %c0_i32_0 = arith.constant 0 : i32
    %c0_i32_1 = arith.constant 0 : i32
    %c0_i32_2 = arith.constant 0 : i32
    return %arg0, %c0_i32, %c0_i32_0, %c0_i32_1 : i32, i32, i32, i32
  }
}

</mosaic_0001>

<llo_original>
// kernel: tile.37
$region0: #{tile.37}
  #allocation0 [shape = 's32[1]{0}', space=sflag, size = 0x4, scoped, tag = 'scoped memory for tile.37']
  %s0 = inlined_call_operand.vmem [shape: f32[4], index: 0, kind: input, shape index: {}]
  %s1 = inlined_call_operand.vmem [shape: f32[16,4], index: 1, kind: output, shape index: {}]
  // Predicated region
  $region2: #{tile.37} parent=0 // pred_check
    _
  $region3: #{tile.37} parent=0 // pred_check_branch
    %3 = sbr.rel (0) target = $region5
  $region4: #{tile.37} parent=0 // pred_region
    _
  $region5: #{tile.37} parent=0 // pred_fallthru
    _
  %v4 = vld [vmem:[%s0] ss:$0 sm:$0xff]
  %5 = vst [vmem:[%s1] sm:$0xff] %v4
  %s6 = scalar_lea.vmem %s1, 8
  %7 = vst [vmem:[%s6] sm:$0xff] %v4

// kernel: tile.38
$region0: #{tile.38}
  %s0 = inlined_call_operand.vmem [shape: f32[16,4], index: 0, kind: input, shape index: {}]
  %s1 = inlined_call_operand.vmem [shape: f32[1,64], index: 1, kind: output, shape index: {}]
  $region1: #{tile.38} parent=0
    #allocation0 [shape = 'u8[4096]{0}', space=vmem, size = 0x1000, scoped, tag = 'scoped mem for output reshape']
    %v2 = vld [vmem:[%s0] sm:$0x1]
    %vm3 = vcmask 31744
    %4 = vst.msk [vmem:[#allocation0] sm:$0x1] %vm3, %v2
    %s5 = scalar_lea.vmem %s0, 15
    %v6 = vld [vmem:[%s5] sm:$0x1]
    %7 = vrot.lane.b32.xlu0 %v6, 60
    %v8 = vpop.permute.xlu0 %7
    %vm9 = vcmask 523744
    %10 = vst.msk [vmem:[#allocation0] sm:$0x1] %vm9, %v8
    %s11 = scalar_lea.vmem %s0, 14
    %v12 = vld [vmem:[%s11] sm:$0x1]
    %13 = vrot.lane.b32.xlu0 %v12, 56
    %v14 = vpop.permute.xlu0 %13
    %vm15 = vcmask 490944
    %16 = vst.msk [vmem:[#allocation0] sm:$0x1] %vm15, %v14
    %s17 = scalar_lea.vmem %s0, 13
    %v18 = vld [vmem:[%s17] sm:$0x1]
    %19 = vrot.lane.b32.xlu0 %v18, 52
    %v20 = vpop.permute.xlu0 %19
    %vm21 = vcmask 458144
    %22 = vst.msk [vmem:[#allocation0] sm:$0x1] %vm21, %v20
    %s23 = scalar_lea.vmem %s0, 12
    %v24 = vld [vmem:[%s23] sm:$0x1]
    %25 = vrot.lane.b32.xlu0 %v24, 48
    %v26 = vpop.permute.xlu0 %25
    %vm27 = vcmask 425344
    %28 = vst.msk [vmem:[#allocation0] sm:$0x1] %vm27, %v26
    %s29 = scalar_lea.vmem %s0, 11
    %v30 = vld [vmem:[%s29] sm:$0x1]
    %31 = vrot.lane.b32.xlu0 %v30, 44
    %v32 = vpop.permute.xlu0 %31
    %vm33 = vcmask 392544
    %34 = vst.msk [vmem:[#allocation0] sm:$0x1] %vm33, %v32
    %s35 = scalar_lea.vmem %s0, 10
    %v36 = vld [vmem:[%s35] sm:$0x1]
    %37 = vrot.lane.b32.xlu0 %v36, 40
    %v38 = vpop.permute.xlu0 %37
    %vm39 = vcmask 359744
    %40 = vst.msk [vmem:[#allocation0] sm:$0x1] %vm39, %v38
    %s41 = scalar_lea.vmem %s0, 9
    %v42 = vld [vmem:[%s41] sm:$0x1]
    %43 = vrot.lane.b32.xlu0 %v42, 36
    %v44 = vpop.permute.xlu0 %43
    %vm45 = vcmask 326944
    %46 = vst.msk [vmem:[#allocation0] sm:$0x1] %vm45, %v44
    %s47 = scalar_lea.vmem %s0, 8
    %v48 = vld [vmem:[%s47] sm:$0x1]
    %49 = vrot.lane.b32.xlu0 %v48, 32
    %v50 = vpop.permute.xlu0 %49
    %vm51 = vcmask 294144
    %52 = vst.msk [vmem:[#allocation0] sm:$0x1] %vm51, %v50
    %s53 = scalar_lea.vmem %s0, 7
    %v54 = vld [vmem:[%s53] sm:$0x1]
    %55 = vrot.lane.b32.xlu0 %v54, 28
    %v56 = vpop.permute.xlu0 %55
    %vm57 = vcmask 261344
    %58 = vst.msk [vmem:[#allocation0] sm:$0x1] %vm57, %v56
    %s59 = scalar_lea.vmem %s0, 6
    %v60 = vld [vmem:[%s59] sm:$0x1]
    %61 = vrot.lane.b32.xlu0 %v60, 24
    %v62 = vpop.permute.xlu0 %61
    %vm63 = vcmask 228544
    %64 = vst.msk [vmem:[#allocation0] sm:$0x1] %vm63, %v62
    %s65 = scalar_lea.vmem %s0, 5
    %v66 = vld [vmem:[%s65] sm:$0x1]
    %67 = vrot.lane.b32.xlu0 %v66, 20
    %v68 = vpop.permute.xlu0 %67
    %vm69 = vcmask 195744
    %70 = vst.msk [vmem:[#allocation0] sm:$0x1] %vm69, %v68
    %s71 = scalar_lea.vmem %s0, 4
    %v72 = vld [vmem:[%s71] sm:$0x1]
    %73 = vrot.lane.b32.xlu0 %v72, 16
    %v74 = vpop.permute.xlu0 %73
    %vm75 = vcmask 162944
    %76 = vst.msk [vmem:[#allocation0] sm:$0x1] %vm75, %v74
    %s77 = scalar_lea.vmem %s0, 3
    %v78 = vld [vmem:[%s77] sm:$0x1]
    %79 = vrot.lane.b32.xlu0 %v78, 12
    %v80 = vpop.permute.xlu0 %79
    %vm81 = vcmask 130144
    %82 = vst.msk [vmem:[#allocation0] sm:$0x1] %vm81, %v80
    %s83 = scalar_lea.vmem %s0, 2
    %v84 = vld [vmem:[%s83] sm:$0x1]
    %85 = vrot.lane.b32.xlu0 %v84, 8
    %v86 = vpop.permute.xlu0 %85
    %vm87 = vcmask 97344
    %88 = vst.msk [vmem:[#allocation0] sm:$0x1] %vm87, %v86
    %s89 = scalar_lea.vmem %s0, 1
    %v90 = vld [vmem:[%s89] sm:$0x1]
    %91 = vrot.lane.b32.xlu0 %v90, 4
    %v92 = vpop.permute.xlu0 %91
    %vm93 = vcmask 64544
    %94 = vst.msk [vmem:[#allocation0] sm:$0x1] %vm93, %v92
    %s96 = ssub.s32 2, 1
    %v97 = vld [vmem:[#allocation0] sm:%s96]
    %s99 = ssub.s32 2, 1
    %100 = vst [vmem:[%s1] sm:%s99] %v97

// kernel: tile.41
$region0: #{tile.41}
  #allocation2 [shape = 's32[1]{0}', space=sflag, size = 0x4, scoped, tag = 'scoped memory for tile.41']
  %s0 = inlined_call_operand.hbm [shape: f32[8], index: 0, kind: input, shape index: {}]
  %s1 = inlined_call_operand.vmem [shape: f32[16,8], index: 1, kind: output, shape index: {}]
  $region1: #{tile.41} parent=0
    #allocation0 [shape = 'u8[512]{0}', space=vmem, size = 0x400, scoped, tag = 'operand span for operand 0']
    #allocation1 [shape = 's32[1]{0}', space=sflag, size = 0x4, scoped, tag = 'scoped memory for tile.41']
    %2 = vsyncpa [#allocation1], 0
    // Predicated region
    $region2: #{tile.41} parent=1 // pred_check
      _
    $region3: #{tile.41} parent=1 // pred_check_branch
      %4 = sbr.rel (0) target = $region5
    $region4: #{tile.41} parent=1 // pred_region
      %6 = vsyncadd [#allocation1], 0
      %s8 = sshll.u32 %s0, 4
      %s9 = int_to_ptr.hbm [resolvable:$true] %s8
      %s10 = sshll.u32 [#allocation0], 4
      %s11 = int_to_ptr.vmem [resolvable:$true] %s10
      %13 = dma.hbm_to_vmem [thread:$0]  %s9, 16, %s11, [#allocation1]
    $region5: #{tile.41} parent=1 // pred_fallthru
      _
    // Predicated region
    $region6: #{tile.41} parent=1 // pred_check
      _
    $region7: #{tile.41} parent=1 // pred_check_branch
      %15 = sbr.rel (0) target = $region9
    $region8: #{tile.41} parent=1 // pred_region
      %17 = dma.done [#allocation1], 16
    $region9: #{tile.41} parent=1 // pred_fallthru
      _
    %v18 = vld [vmem:[#allocation0] ss:$0 sm:$0xff]
    %19 = vst [vmem:[%s1] sm:$0xff] %v18
    %s20 = scalar_lea.vmem %s1, 8
    %21 = vst [vmem:[%s20] sm:$0xff] %v18
    %22 = vsyncpa [#allocation1], 1

// kernel: tile.42
$region0: #{tile.42}
  %s0 = inlined_call_operand.vmem [shape: f32[16,8], index: 0, kind: input, shape index: {}]
  %s1 = inlined_call_operand.vmem [shape: f32[1,128], index: 1, kind: output, shape index: {}]
  $region1: #{tile.42} parent=0
    #allocation0 [shape = 'u8[4096]{0}', space=vmem, size = 0x1000, scoped, tag = 'scoped mem for output reshape']
    %v2 = vld [vmem:[%s0] sm:$0x1]
    %vm3 = vcmask 64512
    %4 = vst.msk [vmem:[#allocation0] sm:$0x1] %vm3, %v2
    %s5 = scalar_lea.vmem %s0, 15
    %v6 = vld [vmem:[%s5] sm:$0x1]
    %7 = vrot.lane.b32.xlu0 %v6, 120
    %v8 = vpop.permute.xlu0 %7
    %vm9 = vcmask 1048512
    %10 = vst.msk [vmem:[#allocation0] sm:$0x1] %vm9, %v8
    %s11 = scalar_lea.vmem %s0, 14
    %v12 = vld [vmem:[%s11] sm:$0x1]
    %13 = vrot.lane.b32.xlu0 %v12, 112
    %v14 = vpop.permute.xlu0 %13
    %vm15 = vcmask 982912
    %16 = vst.msk [vmem:[#allocation0] sm:$0x1] %vm15, %v14
    %s17 = scalar_lea.vmem %s0, 13
    %v18 = vld [vmem:[%s17] sm:$0x1]
    %19 = vrot.lane.b32.xlu0 %v18, 104
    %v20 = vpop.permute.xlu0 %19
    %vm21 = vcmask 917312
    %22 = vst.msk [vmem:[#allocation0] sm:$0x1] %vm21, %v20
    %s23 = scalar_lea.vmem %s0, 12
    %v24 = vld [vmem:[%s23] sm:$0x1]
    %25 = vrot.lane.b32.xlu0 %v24, 96
    %v26 = vpop.permute.xlu0 %25
    %vm27 = vcmask 851712
    %28 = vst.msk [vmem:[#allocation0] sm:$0x1] %vm27, %v26
    %s29 = scalar_lea.vmem %s0, 11
    %v30 = vld [vmem:[%s29] sm:$0x1]
    %31 = vrot.lane.b32.xlu0 %v30, 88
    %v32 = vpop.permute.xlu0 %31
    %vm33 = vcmask 786112
    %34 = vst.msk [vmem:[#allocation0] sm:$0x1] %vm33, %v32
    %s35 = scalar_lea.vmem %s0, 10
    %v36 = vld [vmem:[%s35] sm:$0x1]
    %37 = vrot.lane.b32.xlu0 %v36, 80
    %v38 = vpop.permute.xlu0 %37
    %vm39 = vcmask 720512
    %40 = vst.msk [vmem:[#allocation0] sm:$0x1] %vm39, %v38
    %s41 = scalar_lea.vmem %s0, 9
    %v42 = vld [vmem:[%s41] sm:$0x1]
    %43 = vrot.lane.b32.xlu0 %v42, 72
    %v44 = vpop.permute.xlu0 %43
    %vm45 = vcmask 654912
    %46 = vst.msk [vmem:[#allocation0] sm:$0x1] %vm45, %v44
    %s47 = scalar_lea.vmem %s0, 8
    %v48 = vld [vmem:[%s47] sm:$0x1]
    %49 = vrot.lane.b32.xlu0 %v48, 64
    %v50 = vpop.permute.xlu0 %49
    %vm51 = vcmask 589312
    %52 = vst.msk [vmem:[#allocation0] sm:$0x1] %vm51, %v50
    %s53 = scalar_lea.vmem %s0, 7
    %v54 = vld [vmem:[%s53] sm:$0x1]
    %55 = vrot.lane.b32.xlu0 %v54, 56
    %v56 = vpop.permute.xlu0 %55
    %vm57 = vcmask 523712
    %58 = vst.msk [vmem:[#allocation0] sm:$0x1] %vm57, %v56
    %s59 = scalar_lea.vmem %s0, 6
    %v60 = vld [vmem:[%s59] sm:$0x1]
    %61 = vrot.lane.b32.xlu0 %v60, 48
    %v62 = vpop.permute.xlu0 %61
    %vm63 = vcmask 458112
    %64 = vst.msk [vmem:[#allocation0] sm:$0x1] %vm63, %v62
    %s65 = scalar_lea.vmem %s0, 5
    %v66 = vld [vmem:[%s65] sm:$0x1]
    %67 = vrot.lane.b32.xlu0 %v66, 40
    %v68 = vpop.permute.xlu0 %67
    %vm69 = vcmask 392512
    %70 = vst.msk [vmem:[#allocation0] sm:$0x1] %vm69, %v68
    %s71 = scalar_lea.vmem %s0, 4
    %v72 = vld [vmem:[%s71] sm:$0x1]
    %73 = vrot.lane.b32.xlu0 %v72, 32
    %v74 = vpop.permute.xlu0 %73
    %vm75 = vcmask 326912
    %76 = vst.msk [vmem:[#allocation0] sm:$0x1] %vm75, %v74
    %s77 = scalar_lea.vmem %s0, 3
    %v78 = vld [vmem:[%s77] sm:$0x1]
    %79 = vrot.lane.b32.xlu0 %v78, 24
    %v80 = vpop.permute.xlu0 %79
    %vm81 = vcmask 261312
    %82 = vst.msk [vmem:[#allocation0] sm:$0x1] %vm81, %v80
    %s83 = scalar_lea.vmem %s0, 2
    %v84 = vld [vmem:[%s83] sm:$0x1]
    %85 = vrot.lane.b32.xlu0 %v84, 16
    %v86 = vpop.permute.xlu0 %85
    %vm87 = vcmask 195712
    %88 = vst.msk [vmem:[#allocation0] sm:$0x1] %vm87, %v86
    %s89 = scalar_lea.vmem %s0, 1
    %v90 = vld [vmem:[%s89] sm:$0x1]
    %91 = vrot.lane.b32.xlu0 %v90, 8
    %v92 = vpop.permute.xlu0 %91
    %vm93 = vcmask 130112
    %94 = vst.msk [vmem:[#allocation0] sm:$0x1] %vm93, %v92
    %s96 = ssub.s32 2, 1
    %v97 = vld [vmem:[#allocation0] sm:%s96]
    %s99 = ssub.s32 2, 1
    %100 = vst [vmem:[%s1] sm:%s99] %v97

// kernel: tile.56
$region0: #{tile.56}
  #allocation0 [shape = 's32[1]{0}', space=sflag, size = 0x4, scoped, tag = 'scoped memory for tile.56']
  %s0 = inlined_call_operand.vmem [shape: f32[8], index: 0, kind: input, shape index: {}]
  %s1 = inlined_call_operand.vmem [shape: f32[32,8], index: 1, kind: output, shape index: {}]
  // Predicated region
  $region2: #{tile.56} parent=0 // pred_check
    _
  $region3: #{tile.56} parent=0 // pred_check_branch
    %3 = sbr.rel (0) target = $region5
  $region4: #{tile.56} parent=0 // pred_region
    _
  $region5: #{tile.56} parent=0 // pred_fallthru
    _
  %v4 = vld [vmem:[%s0] ss:$0 sm:$0xff]
  %5 = vst [vmem:[%s1] sm:$0xff] %v4
  %s6 = scalar_lea.vmem %s1, 8
  %7 = vst [vmem:[%s6] sm:$0xff] %v4
  %s8 = scalar_lea.vmem %s1, 16
  %9 = vst [vmem:[%s8] sm:$0xff] %v4
  %s10 = scalar_lea.vmem %s1, 24
  %11 = vst [vmem:[%s10] sm:$0xff] %v4

// kernel: tile.57
$region0: #{tile.57}
  %s0 = inlined_call_operand.vmem [shape: f32[32,8], index: 0, kind: input, shape index: {}]
  %s1 = inlined_call_operand.vmem [shape: f32[1,256], index: 1, kind: output, shape index: {}]
  $region1: #{tile.57} parent=0
    #allocation0 [shape = 'u8[8192]{0}', space=vmem, size = 0x2000, scoped, tag = 'scoped mem for output reshape']
    %s2 = smov 3
    %v3 = vld [vmem:[%s0] ss:$16 sm:%s2]
    %vm4 = vcmask 64512
    %5 = vst.msk [vmem:[#allocation0] ss:$8 sm:$0x3] %vm4, %v3
    %s6 = scalar_lea.vmem %s0, 15
    %s7 = smov 3
    %v8 = vld [vmem:[%s6] ss:$16 sm:%s7]
    %9 = vrot.lane.b32.xlu0 %v8, 120
    %v10 = vpop.permute.xlu0 %9
    %vm11 = vcmask 1048512
    %12 = vst.msk [vmem:[#allocation0] ss:$8 sm:$0x3] %vm11, %v10
    %s13 = scalar_lea.vmem %s0, 14
    %s14 = smov 3
    %v15 = vld [vmem:[%s13] ss:$16 sm:%s14]
    %16 = vrot.lane.b32.xlu0 %v15, 112
    %v17 = vpop.permute.xlu0 %16
    %vm18 = vcmask 982912
    %19 = vst.msk [vmem:[#allocation0] ss:$8 sm:$0x3] %vm18, %v17
    %s20 = scalar_lea.vmem %s0, 13
    %s21 = smov 3
    %v22 = vld [vmem:[%s20] ss:$16 sm:%s21]
    %23 = vrot.lane.b32.xlu0 %v22, 104
    %v24 = vpop.permute.xlu0 %23
    %vm25 = vcmask 917312
    %26 = vst.msk [vmem:[#allocation0] ss:$8 sm:$0x3] %vm25, %v24
    %s27 = scalar_lea.vmem %s0, 12
    %s28 = smov 3
    %v29 = vld [vmem:[%s27] ss:$16 sm:%s28]
    %30 = vrot.lane.b32.xlu0 %v29, 96
    %v31 = vpop.permute.xlu0 %30
    %vm32 = vcmask 851712
    %33 = vst.msk [vmem:[#allocation0] ss:$8 sm:$0x3] %vm32, %v31
    %s34 = scalar_lea.vmem %s0, 11
    %s35 = smov 3
    %v36 = vld [vmem:[%s34] ss:$16 sm:%s35]
    %37 = vrot.lane.b32.xlu0 %v36, 88
    %v38 = vpop.permute.xlu0 %37
    %vm39 = vcmask 786112
    %40 = vst.msk [vmem:[#allocation0] ss:$8 sm:$0x3] %vm39, %v38
    %s41 = scalar_lea.vmem %s0, 10
    %s42 = smov 3
    %v43 = vld [vmem:[%s41] ss:$16 sm:%s42]
    %44 = vrot.lane.b32.xlu0 %v43, 80
    %v45 = vpop.permute.xlu0 %44
    %vm46 = vcmask 720512
    %47 = vst.msk [vmem:[#allocation0] ss:$8 sm:$0x3] %vm46, %v45
    %s48 = scalar_lea.vmem %s0, 9
    %s49 = smov 3
    %v50 = vld [vmem:[%s48] ss:$16 sm:%s49]
    %51 = vrot.lane.b32.xlu0 %v50, 72
    %v52 = vpop.permute.xlu0 %51
    %vm53 = vcmask 654912
    %54 = vst.msk [vmem:[#allocation0] ss:$8 sm:$0x3] %vm53, %v52
    %s55 = scalar_lea.vmem %s0, 8
    %s56 = smov 3
    %v57 = vld [vmem:[%s55] ss:$16 sm:%s56]
    %58 = vrot.lane.b32.xlu0 %v57, 64
    %v59 = vpop.permute.xlu0 %58
    %vm60 = vcmask 589312
    %61 = vst.msk [vmem:[#allocation0] ss:$8 sm:$0x3] %vm60, %v59
    %s62 = scalar_lea.vmem %s0, 7
    %s63 = smov 3
    %v64 = vld [vmem:[%s62] ss:$16 sm:%s63]
    %65 = vrot.lane.b32.xlu0 %v64, 56
    %v66 = vpop.permute.xlu0 %65
    %vm67 = vcmask 523712
    %68 = vst.msk [vmem:[#allocation0] ss:$8 sm:$0x3] %vm67, %v66
    %s69 = scalar_lea.vmem %s0, 6
    %s70 = smov 3
    %v71 = vld [vmem:[%s69] ss:$16 sm:%s70]
    %72 = vrot.lane.b32.xlu0 %v71, 48
    %v73 = vpop.permute.xlu0 %72
    %vm74 = vcmask 458112
    %75 = vst.msk [vmem:[#allocation0] ss:$8 sm:$0x3] %vm74, %v73
    %s76 = scalar_lea.vmem %s0, 5
    %s77 = smov 3
    %v78 = vld [vmem:[%s76] ss:$16 sm:%s77]
    %79 = vrot.lane.b32.xlu0 %v78, 40
    %v80 = vpop.permute.xlu0 %79
    %vm81 = vcmask 392512
    %82 = vst.msk [vmem:[#allocation0] ss:$8 sm:$0x3] %vm81, %v80
    %s83 = scalar_lea.vmem %s0, 4
    %s84 = smov 3
    %v85 = vld [vmem:[%s83] ss:$16 sm:%s84]
    %86 = vrot.lane.b32.xlu0 %v85, 32
    %v87 = vpop.permute.xlu0 %86
    %vm88 = vcmask 326912
    %89 = vst.msk [vmem:[#allocation0] ss:$8 sm:$0x3] %vm88, %v87
    %s90 = scalar_lea.vmem %s0, 3
    %s91 = smov 3
    %v92 = vld [vmem:[%s90] ss:$16 sm:%s91]
    %93 = vrot.lane.b32.xlu0 %v92, 24
    %v94 = vpop.permute.xlu0 %93
    %vm95 = vcmask 261312
    %96 = vst.msk [vmem:[#allocation0] ss:$8 sm:$0x3] %vm95, %v94
    %s97 = scalar_lea.vmem %s0, 2
    %s98 = smov 3
    %v99 = vld [vmem:[%s97] ss:$16 sm:%s98]
    %100 = vrot.lane.b32.xlu0 %v99, 16
    %v101 = vpop.permute.xlu0 %100
    %vm102 = vcmask 195712
    %103 = vst.msk [vmem:[#allocation0] ss:$8 sm:$0x3] %vm102, %v101
    %s104 = scalar_lea.vmem %s0, 1
    %s105 = smov 3
    %v106 = vld [vmem:[%s104] ss:$16 sm:%s105]
    %107 = vrot.lane.b32.xlu0 %v106, 8
    %v108 = vpop.permute.xlu0 %107
    %vm109 = vcmask 130112
    %110 = vst.msk [vmem:[#allocation0] ss:$8 sm:$0x3] %vm109, %v108
    %s112 = ssub.s32 2, 1
    %v113 = vld [vmem:[#allocation0] sm:%s112]
    %s115 = ssub.s32 2, 1
    %116 = vst [vmem:[%s1] sm:%s115] %v113
    %s117 = scalar_lea.vmem [#allocation0], 8
    %v118 = vld [vmem:[%s117] sm:%s112]
    %s120 = ssub.s32 2, 1
    %s121 = scalar_lea.vmem %s1, 1
    %122 = vst [vmem:[%s121] sm:%s120] %v118

// kernel: tile.51
$region0: #{tile.51}
  #allocation0 [shape = 's32[1]{0}', space=sflag, size = 0x4, scoped, tag = 'scoped memory for tile.51']
  %s0 = inlined_call_operand.vmem [shape: f32[8], index: 0, kind: input, shape index: {}]
  %s1 = inlined_call_operand.vmem [shape: f32[16,8], index: 1, kind: output, shape index: {}]
  // Predicated region
  $region2: #{tile.51} parent=0 // pred_check
    _
  $region3: #{tile.51} parent=0 // pred_check_branch
    %3 = sbr.rel (0) target = $region5
  $region4: #{tile.51} parent=0 // pred_region
    _
  $region5: #{tile.51} parent=0 // pred_fallthru
    _
  %v4 = vld [vmem:[%s0] ss:$0 sm:$0xff]
  %5 = vst [vmem:[%s1] sm:$0xff] %v4
  %s6 = scalar_lea.vmem %s1, 8
  %7 = vst [vmem:[%s6] sm:$0xff] %v4

// kernel: res_block_decoder.2
$region0: #{res_block_decoder.2}
  #allocation0 [shape = 'u32[]', space=smem, size = 0x4, offset = 0x4, fixed_abs, tag = 'smem constant byte address 0x4 - core index']
  #allocation1 [shape = 'u32[72,128]{1,0:T(1,128)}', space=vmem, size = 0x9000, scoped, tag = 'internal scratch']
  %s0 = inlined_call_operand.vmem [shape: f32[2,16,64], index: 0, kind: input, shape index: {}]
  %s1 = inlined_call_operand.vmem [shape: f32[1,64], index: 1, kind: input, shape index: {}]
  %s2 = inlined_call_operand.vmem [shape: f32[1,64], index: 2, kind: input, shape index: {}]
  %s3 = inlined_call_operand.hbm [shape: f32[192,128], index: 3, kind: input, shape index: {}]
  %s4 = inlined_call_operand.vmem [shape: f32[1,128], index: 4, kind: input, shape index: {}]
  %s5 = inlined_call_operand.vmem [shape: f32[2,16,128], index: 5, kind: output, shape index: {0}]
  %s6 = inlined_call_operand.vmem [shape: f32[1,2,128], index: 6, kind: output, shape index: {1}]
  %7 = xla_tuple %s5, %s6
  %s8 = sld [smem:[#allocation0]]
  $region42: #{res_block_decoder.2} parent=0
    _
  %s10 = ssub.s32 1, %s8
  %s11 = scalar_select 0, %s10, %s8
  $region1: #{res_block_decoder.2} parent=0
    #allocation2 [shape = 'u8[98304]{0}', space=vmem, size = 0x18000, scoped, tag = 'input window, operand 3, single buffered']
    #allocation3 [shape = 's32[1]{0}', space=sflag, size = 0x4, scoped, tag = 'scoped memory for res_block_decoder.2']
    %12 = vsyncpa [#allocation3], 0
    // Predicated region
    $region2: #{res_block_decoder.2} parent=1 // pred_check
      _
    $region3: #{res_block_decoder.2} parent=1 // pred_check_branch
      %14 = sbr.rel (0) target = $region5
    $region4: #{res_block_decoder.2} parent=1 // pred_region
      _
    $region5: #{res_block_decoder.2} parent=1 // pred_fallthru
      _
    // Predicated region
    $region6: #{res_block_decoder.2} parent=1 // pred_check
      _
    $region7: #{res_block_decoder.2} parent=1 // pred_check_branch
      %16 = sbr.rel (0) target = $region9
    $region8: #{res_block_decoder.2} parent=1 // pred_region
      _
    $region9: #{res_block_decoder.2} parent=1 // pred_fallthru
      _
    // Predicated region
    $region10: #{res_block_decoder.2} parent=1 // pred_check
      _
    $region11: #{res_block_decoder.2} parent=1 // pred_check_branch
      %18 = sbr.rel (0) target = $region13
    $region12: #{res_block_decoder.2} parent=1 // pred_region
      _
    $region13: #{res_block_decoder.2} parent=1 // pred_fallthru
      _
    // Predicated region
    $region14: #{res_block_decoder.2} parent=1 // pred_check
      _
    $region15: #{res_block_decoder.2} parent=1 // pred_check_branch
      %20 = sbr.rel (0) target = $region17
    $region16: #{res_block_decoder.2} parent=1 // pred_region
      %22 = vsyncadd [#allocation3], 0
      %s23 = sshll.u32 %s3, 4
      %s24 = int_to_ptr.hbm [resolvable:$true] %s23
      %s25 = sshll.u32 [#allocation2], 4
      %s26 = int_to_ptr.vmem [resolvable:$true] %s25
      %31 = dma.hbm_to_vmem [thread:$0]  %s24, 3072, %s26, [#allocation3], 128, 128, 8
    $region17: #{res_block_decoder.2} parent=1 // pred_fallthru
      _
    // Predicated region
    $region18: #{res_block_decoder.2} parent=1 // pred_check
      _
    $region19: #{res_block_decoder.2} parent=1 // pred_check_branch
      %33 = sbr.rel (0) target = $region21
    $region20: #{res_block_decoder.2} parent=1 // pred_region
      _
    $region21: #{res_block_decoder.2} parent=1 // pred_fallthru
      _
    // Predicated region
    $region22: #{res_block_decoder.2} parent=1 // pred_check
      _
    $region23: #{res_block_decoder.2} parent=1 // pred_check_branch
      %35 = sbr.rel (0) target = $region25
    $region24: #{res_block_decoder.2} parent=1 // pred_region
      %37 = dma.done [#allocation3], 3072
    $region25: #{res_block_decoder.2} parent=1 // pred_fallthru
      _
    %v38 = vld [vmem:[%s0] sm:$0xff]
    %v39 = vld [vmem:[%s0 + $0x8] sm:$0xff]
    %v40 = vld [vmem:[%s0 + $0x10] sm:$0xff]
    %v41 = vld [vmem:[%s0 + $0x18] sm:$0xff]
    %v42 = vld [vmem:[%s1] sm:$0x1]
    %v44 = vperm.slane %v42, 0
    %v46 = vmul.f32 %v38, %v44
    %v47 = vmul.f32 %v39, %v44
    %v48 = vmul.f32 %v40, %v44
    %v49 = vmul.f32 %v41, %v44
    %v50 = vld [vmem:[%s2] sm:$0x1]
    %v52 = vperm.slane %v50, 0
    %v54 = vadd.f32 %v46, %v52
    %v55 = vadd.f32 %v47, %v52
    %v56 = vadd.f32 %v48, %v52
    %v57 = vadd.f32 %v49, %v52
    %vm58 = vcmp.ge.f32.partialorder %v54, 0.0
    %vm59 = vcmp.ge.f32.partialorder %v55, 0.0
    %vm60 = vcmp.ge.f32.partialorder %v56, 0.0
    %vm61 = vcmp.ge.f32.partialorder %v57, 0.0
    %v62 = vmul.f32 %v54, 0.01
    %v63 = vmul.f32 %v55, 0.01
    %v64 = vmul.f32 %v56, 0.01
    %v65 = vmul.f32 %v57, 0.01
    %v66 = vsel %vm58, %v54, %v62
    %v67 = vsel %vm59, %v55, %v63
    %v68 = vsel %vm60, %v56, %v64
    %v69 = vsel %vm61, %v57, %v65
    %v70 = vlaneseq
    %v71 = vshrl.u32 %v70, 7
    %v72 = vadd.s32 %v71, 8
    %v73 = vadd.s32 %v71, 16
    %v74 = vadd.s32 %v71, 24
    %vm75 = vcmp.ne.s32.totalorder %v71, 0
    %vm76 = vcmp.ne.s32.totalorder %v72, 0
    %vm77 = vcmp.ne.s32.totalorder %v73, 0
    %vm78 = vcmp.ne.s32.totalorder %v74, 0
    %vm79 = vcmp.ne.s32.totalorder %v71, 15
    %vm80 = vcmp.ne.s32.totalorder %v72, 15
    %vm81 = vcmp.ne.s32.totalorder %v73, 15
    %vm82 = vcmp.ne.s32.totalorder %v74, 15
    %vm83 = vcmp.ne.s32.totalorder %v71, 16
    %vm84 = vcmp.ne.s32.totalorder %v72, 16
    %vm85 = vcmp.ne.s32.totalorder %v73, 16
    %vm86 = vcmp.ne.s32.totalorder %v74, 16
    %vm87 = vmand %vm75, %vm83
    %vm88 = vmand %vm76, %vm84
    %vm89 = vmand %vm77, %vm85
    %vm90 = vmand %vm78, %vm86
    %vm91 = vcmp.ne.s32.totalorder %v71, 31
    %vm92 = vcmp.ne.s32.totalorder %v72, 31
    %vm93 = vcmp.ne.s32.totalorder %v73, 31
    %vm94 = vcmp.ne.s32.totalorder %v74, 31
    %vm95 = vmand %vm79, %vm91
    %vm96 = vmand %vm80, %vm92
    %vm97 = vmand %vm81, %vm93
    %vm98 = vmand %vm82, %vm94
    %v99 = vrot.slane %v66, 7
    %v100 = vrot.slane %v67, 7
    %v101 = vrot.slane %v68, 7
    %v102 = vrot.slane %v69, 7
    %vm103 = vcmp.lt.s32.totalorder %v71, 1
    %v104 = vsel %vm103, %v101, %v102
    %v105 = vsel %vm103, %v100, %v101
    %v106 = vsel %vm103, %v99, %v100
    %v107 = vsel %vm103, %v102, %v99
    %v108 = vsel %vm87, 1, 0
    %v109 = vsel %vm88, 1, 0
    %v110 = vsel %vm89, 1, 0
    %v111 = vsel %vm90, 1, 0
    %vm112 = vcmp.eq.s32.totalorder %v108, 1
    %vm113 = vcmp.eq.s32.totalorder %v109, 1
    %vm114 = vcmp.eq.s32.totalorder %v110, 1
    %vm115 = vcmp.eq.s32.totalorder %v111, 1
    %v116 = vsel %vm112, %v107, 0.0
    %v117 = vsel %vm113, %v106, 0.0
    %v118 = vsel %vm114, %v105, 0.0
    %v119 = vsel %vm115, %v104, 0.0
    %v120 = vrot.slane %v66, 1
    %v121 = vrot.slane %v67, 1
    %v122 = vrot.slane %v68, 1
    %v123 = vrot.slane %v69, 1
    %vm124 = vcmp.lt.s32.totalorder %v71, 7
    %v125 = vsel %vm124, %v122, %v123
    %v126 = vsel %vm124, %v121, %v122
    %v127 = vsel %vm124, %v120, %v121
    %v128 = vsel %vm124, %v123, %v120
    %v129 = vsel %vm95, 1, 0
    %v130 = vsel %vm96, 1, 0
    %v131 = vsel %vm97, 1, 0
    %v132 = vsel %vm98, 1, 0
    %vm133 = vcmp.eq.s32.totalorder %v129, 1
    %vm134 = vcmp.eq.s32.totalorder %v130, 1
    %vm135 = vcmp.eq.s32.totalorder %v131, 1
    %vm136 = vcmp.eq.s32.totalorder %v132, 1
    %v137 = vsel %vm133, %v127, 0.0
    %v138 = vsel %vm134, %v126, 0.0
    %v139 = vsel %vm135, %v125, 0.0
    %v140 = vsel %vm136, %v128, 0.0
    %145 = vrot.lane.b32.xlu0 %v66, 64
    %v146 = vpop.permute.xlu0 %145
    %147 = vrot.lane.b32.xlu0 %v67, 64
    %v148 = vpop.permute.xlu0 %147
    %149 = vrot.lane.b32.xlu0 %v68, 64
    %v150 = vpop.permute.xlu0 %149
    %151 = vrot.lane.b32.xlu0 %v69, 64
    %v152 = vpop.permute.xlu0 %151
    %vm157 = vcmask 523264
    %v158 = vsel %vm157, %v116, %v146
    %v159 = vsel %vm157, %v117, %v148
    %v160 = vsel %vm157, %v118, %v150
    %v161 = vsel %vm157, %v119, %v152
    %v162 = vld [vmem:[#allocation2] sm:$0xff]
    %v163 = vld [vmem:[#allocation2 + $0x8] sm:$0xff]
    %v164 = vld [vmem:[#allocation2 + $0x10] sm:$0xff]
    %v165 = vld [vmem:[#allocation2 + $0x18] sm:$0xff]
    %v166 = vld [vmem:[#allocation2 + $0x20] sm:$0xff]
    %v167 = vld [vmem:[#allocation2 + $0x28] sm:$0xff]
    %v168 = vld [vmem:[#allocation2 + $0x30] sm:$0xff]
    %v169 = vld [vmem:[#allocation2 + $0x38] sm:$0xff]
    %v170 = vld [vmem:[#allocation2 + $0x40] sm:$0xff]
    %v171 = vld [vmem:[#allocation2 + $0x48] sm:$0xff]
    %v172 = vld [vmem:[#allocation2 + $0x50] sm:$0xff]
    %v173 = vld [vmem:[#allocation2 + $0x58] sm:$0xff]
    %v174 = vld [vmem:[#allocation2 + $0x60] sm:$0xff]
    %v175 = vld [vmem:[#allocation2 + $0x68] sm:$0xff]
    %v176 = vld [vmem:[#allocation2 + $0x70] sm:$0xff]
    %v177 = vld [vmem:[#allocation2 + $0x78] sm:$0xff]
    %v178 = vld [vmem:[#allocation2 + $0x80] sm:$0xff]
    %v179 = vld [vmem:[#allocation2 + $0x88] sm:$0xff]
    %v180 = vld [vmem:[#allocation2 + $0x90] sm:$0xff]
    %v181 = vld [vmem:[#allocation2 + $0x98] sm:$0xff]
    %v182 = vld [vmem:[#allocation2 + $0xa0] sm:$0xff]
    %v183 = vld [vmem:[#allocation2 + $0xa8] sm:$0xff]
    %v184 = vld [vmem:[#allocation2 + $0xb0] sm:$0xff]
    %v185 = vld [vmem:[#allocation2 + $0xb8] sm:$0xff]
    %v186 = vld [vmem:[%s4] sm:$0x1]
    %v188 = vperm.slane %v186, 0
    %v191 = vsel %vm157, %v137, 0
    %v194 = vsel %vm157, %v138, 0
    %v197 = vsel %vm157, %v139, 0
    %v200 = vsel %vm157, %v140, 0
    %202 = vmatpush.msra.mxu0 %v177
    %203 = vmatpush.msra.mxu0 %v176
    %204 = vmatpush.msra.mxu0 %v175
    %205 = vmatpush.msra.mxu0 %v174
    %206 = vmatpush.msra.mxu0 %v173
    %207 = vmatpush.msra.mxu0 %v172
    %208 = vmatpush.msra.mxu0 %v171
    %209 = vmatpush.msra.mxu0 %v170
    %210 = vmatpush.msra.mxu0 %v169
    %211 = vmatpush.msra.mxu0 %v168
    %212 = vmatpush.msra.mxu0 %v167
    %213 = vmatpush.msra.mxu0 %v166
    %214 = vmatpush.msra.mxu0 %v165
    %215 = vmatpush.msra.mxu0 %v164
    %216 = vmatpush.msra.mxu0 %v163
    %217 = vmatpush.msra.mxu0 %v162
    %218 = vmatmul.f32.gmra.mxu0 %v158
    %v219 = vpop.f32.mrf.mxu0
    %v220 = vadd.f32 %v188, %v219
    %221 = vmatmul.f32.gmra.mxu0 %v159
    %v222 = vpop.f32.mrf.mxu0
    %v223 = vadd.f32 %v188, %v222
    %224 = vmatmul.f32.gmra.mxu0 %v160
    %v225 = vpop.f32.mrf.mxu0
    %v226 = vadd.f32 %v188, %v225
    %227 = vmatmul.f32.gmra.mxu0 %v161
    %v228 = vpop.f32.mrf.mxu0
    %v229 = vadd.f32 %v188, %v228
    %230 = vdwg.mxu0
    %231 = vmatpush.msra.mxu0 0.0
    %232 = vmatpush.msra.mxu0 0.0
    %233 = vmatpush.msra.mxu0 0.0
    %234 = vmatpush.msra.mxu0 0.0
    %235 = vmatpush.msra.mxu0 0.0
    %236 = vmatpush.msra.mxu0 0.0
    %237 = vmatpush.msra.mxu0 0.0
    %238 = vmatpush.msra.mxu0 0.0
    %239 = vmatpush.msra.mxu0 %v185
    %240 = vmatpush.msra.mxu0 %v184
    %241 = vmatpush.msra.mxu0 %v183
    %242 = vmatpush.msra.mxu0 %v182
    %243 = vmatpush.msra.mxu0 %v181
    %244 = vmatpush.msra.mxu0 %v180
    %245 = vmatpush.msra.mxu0 %v179
    %246 = vmatpush.msra.mxu0 %v178
    %247 = vmatmul.f32.gmra.mxu0 %v191
    %v248 = vpop.f32.mrf.mxu0
    %v249 = vadd.f32 %v220, %v248
    %250 = vmatmul.f32.gmra.mxu0 %v194
    %v251 = vpop.f32.mrf.mxu0
    %v252 = vadd.f32 %v223, %v251
    %253 = vmatmul.f32.gmra.mxu0 %v197
    %v254 = vpop.f32.mrf.mxu0
    %v255 = vadd.f32 %v226, %v254
    %256 = vmatmul.f32.gmra.mxu0 %v200
    %v257 = vpop.f32.mrf.mxu0
    %v258 = vadd.f32 %v229, %v257
    %259 = vdwg.mxu0
    %260 = vst [vmem:[%s5] sm:$0xff] %v249
    %261 = vst [vmem:[%s5 + $0x8] sm:$0xff] %v252
    %262 = vst [vmem:[%s5 + $0x10] sm:$0xff] %v255
    %263 = vst [vmem:[%s5 + $0x18] sm:$0xff] %v258
    %v264 = vadd.f32 %v249, %v252
    %v265 = vadd.f32 %v264, %v255
    %v266 = vadd.f32 %v265, %v258
    %v267 = vrot.slane %v266, 4
    %v268 = vadd.f32 %v266, %v267
    %v269 = vrot.slane %v268, 2
    %v270 = vadd.f32 %v268, %v269
    %v271 = vrot.slane %v270, 1
    %v272 = vadd.f32 %v270, %v271
    %273 = vst [vmem:[%s6] sm:$0x1] %v272
    %v274 = vmul.f32 %v249, %v249
    %v275 = vmul.f32 %v252, %v252
    %v276 = vmul.f32 %v255, %v255
    %v277 = vmul.f32 %v258, %v258
    %v278 = vadd.f32 %v274, %v275
    %v279 = vadd.f32 %v278, %v276
    %v280 = vadd.f32 %v279, %v277
    %v281 = vrot.slane %v280, 4
    %v282 = vadd.f32 %v280, %v281
    %v283 = vrot.slane %v282, 2
    %v284 = vadd.f32 %v282, %v283
    %v285 = vrot.slane %v284, 1
    %v286 = vadd.f32 %v284, %v285
    %287 = vst [vmem:[%s6 + $0x1] sm:$0x1] %v286
    // Predicated region
    $region26: #{res_block_decoder.2} parent=1 // pred_check
      _
    $region27: #{res_block_decoder.2} parent=1 // pred_check_branch
      %289 = sbr.rel (0) target = $region29
    $region28: #{res_block_decoder.2} parent=1 // pred_region
      _
    $region29: #{res_block_decoder.2} parent=1 // pred_fallthru
      _
    // Predicated region
    $region30: #{res_block_decoder.2} parent=1 // pred_check
      _
    $region31: #{res_block_decoder.2} parent=1 // pred_check_branch
      %291 = sbr.rel (0) target = $region33
    $region32: #{res_block_decoder.2} parent=1 // pred_region
      _
    $region33: #{res_block_decoder.2} parent=1 // pred_fallthru
      _
    // Predicated region
    $region34: #{res_block_decoder.2} parent=1 // pred_check
      _
    $region35: #{res_block_decoder.2} parent=1 // pred_check_branch
      %293 = sbr.rel (0) target = $region37
    $region36: #{res_block_decoder.2} parent=1 // pred_region
      _
    $region37: #{res_block_decoder.2} parent=1 // pred_fallthru
      _
    // Predicated region
    $region38: #{res_block_decoder.2} parent=1 // pred_check
      _
    $region39: #{res_block_decoder.2} parent=1 // pred_check_branch
      %295 = sbr.rel (0) target = $region41
    $region40: #{res_block_decoder.2} parent=1 // pred_region
      _
    $region41: #{res_block_decoder.2} parent=1 // pred_fallthru
      _
    %296 = vsyncpa [#allocation3], 1

// kernel: res_block_decoder.3
$region0: #{res_block_decoder.3}
  #allocation0 [shape = 'u32[]', space=smem, size = 0x4, offset = 0x4, fixed_abs, tag = 'smem constant byte address 0x4 - core index']
  #allocation1 [shape = 'u32[72,128]{1,0:T(1,128)}', space=vmem, size = 0x9000, scoped, tag = 'internal scratch']
  %s0 = inlined_call_operand.vmem [shape: f32[2,16,128], index: 0, kind: input, shape index: {}]
  %s1 = inlined_call_operand.vmem [shape: f32[2,16,64], index: 1, kind: input, shape index: {}]
  %s2 = inlined_call_operand.vmem [shape: f32[1,128], index: 2, kind: input, shape index: {}]
  %s3 = inlined_call_operand.vmem [shape: f32[1,128], index: 3, kind: input, shape index: {}]
  %s4 = inlined_call_operand.hbm [shape: f32[192,256], index: 4, kind: input, shape index: {}]
  %s5 = inlined_call_operand.vmem [shape: f32[384,256], index: 5, kind: input, shape index: {}]
  %s6 = inlined_call_operand.vmem [shape: f32[1,256], index: 6, kind: input, shape index: {}]
  %s7 = inlined_call_operand.vmem [shape: f32[2,2,16,256], index: 7, kind: output, shape index: {}]
  %s8 = sld [smem:[#allocation0]]
  $region42: #{res_block_decoder.3} parent=0
    _
  %s10 = ssub.s32 1, %s8
  %s11 = scalar_select 0, %s10, %s8
  $region1: #{res_block_decoder.3} parent=0
    #allocation2 [shape = 'u8[196608]{0}', space=vmem, size = 0x30000, scoped, tag = 'input window, operand 4, single buffered']
    #allocation3 [shape = 's32[1]{0}', space=sflag, size = 0x4, scoped, tag = 'scoped memory for res_block_decoder.3']
    %12 = vsyncpa [#allocation3], 0
    // Predicated region
    $region2: #{res_block_decoder.3} parent=1 // pred_check
      _
    $region3: #{res_block_decoder.3} parent=1 // pred_check_branch
      %14 = sbr.rel (0) target = $region5
    $region4: #{res_block_decoder.3} parent=1 // pred_region
      _
    $region5: #{res_block_decoder.3} parent=1 // pred_fallthru
      _
    // Predicated region
    $region6: #{res_block_decoder.3} parent=1 // pred_check
      _
    $region7: #{res_block_decoder.3} parent=1 // pred_check_branch
      %16 = sbr.rel (0) target = $region9
    $region8: #{res_block_decoder.3} parent=1 // pred_region
      _
    $region9: #{res_block_decoder.3} parent=1 // pred_fallthru
      _
    // Predicated region
    $region10: #{res_block_decoder.3} parent=1 // pred_check
      _
    $region11: #{res_block_decoder.3} parent=1 // pred_check_branch
      %18 = sbr.rel (0) target = $region13
    $region12: #{res_block_decoder.3} parent=1 // pred_region
      _
    $region13: #{res_block_decoder.3} parent=1 // pred_fallthru
      _
    // Predicated region
    $region14: #{res_block_decoder.3} parent=1 // pred_check
      _
    $region15: #{res_block_decoder.3} parent=1 // pred_check_branch
      %20 = sbr.rel (0) target = $region17
    $region16: #{res_block_decoder.3} parent=1 // pred_region
      _
    $region17: #{res_block_decoder.3} parent=1 // pred_fallthru
      _
    // Predicated region
    $region18: #{res_block_decoder.3} parent=1 // pred_check
      _
    $region19: #{res_block_decoder.3} parent=1 // pred_check_branch
      %22 = sbr.rel (0) target = $region21
    $region20: #{res_block_decoder.3} parent=1 // pred_region
      %24 = vsyncadd [#allocation3], 0
      %s25 = sshll.u32 %s4, 4
      %s26 = int_to_ptr.hbm [resolvable:$true] %s25
      %s27 = sshll.u32 [#allocation2], 4
      %s28 = int_to_ptr.vmem [resolvable:$true] %s27
      %33 = dma.hbm_to_vmem [thread:$0]  %s26, 6144, %s28, [#allocation3], 256, 256, 16
    $region21: #{res_block_decoder.3} parent=1 // pred_fallthru
      _
    // Predicated region
    $region22: #{res_block_decoder.3} parent=1 // pred_check
      _
    $region23: #{res_block_decoder.3} parent=1 // pred_check_branch
      %35 = sbr.rel (0) target = $region25
    $region24: #{res_block_decoder.3} parent=1 // pred_region
      _
    $region25: #{res_block_decoder.3} parent=1 // pred_fallthru
      _
    // Predicated region
    $region26: #{res_block_decoder.3} parent=1 // pred_check
      _
    $region27: #{res_block_decoder.3} parent=1 // pred_check_branch
      %37 = sbr.rel (0) target = $region29
    $region28: #{res_block_decoder.3} parent=1 // pred_region
      _
    $region29: #{res_block_decoder.3} parent=1 // pred_fallthru
      _
    // Predicated region
    $region30: #{res_block_decoder.3} parent=1 // pred_check
      _
    $region31: #{res_block_decoder.3} parent=1 // pred_check_branch
      %39 = sbr.rel (0) target = $region33
    $region32: #{res_block_decoder.3} parent=1 // pred_region
      %41 = dma.done [#allocation3], 6144
    $region33: #{res_block_decoder.3} parent=1 // pred_fallthru
      _
    %v42 = vld [vmem:[%s0] sm:$0xff]
    %v43 = vld [vmem:[%s0 + $0x8] sm:$0xff]
    %v44 = vld [vmem:[%s0 + $0x10] sm:$0xff]
    %v45 = vld [vmem:[%s0 + $0x18] sm:$0xff]
    %v46 = vld [vmem:[%s2] sm:$0x1]
    %v48 = vperm.slane %v46, 0
    %v50 = vmul.f32 %v42, %v48
    %v51 = vmul.f32 %v43, %v48
    %v52 = vmul.f32 %v44, %v48
    %v53 = vmul.f32 %v45, %v48
    %v54 = vld [vmem:[%s3] sm:$0x1]
    %v56 = vperm.slane %v54, 0
    %v58 = vadd.f32 %v50, %v56
    %v59 = vadd.f32 %v51, %v56
    %v60 = vadd.f32 %v52, %v56
    %v61 = vadd.f32 %v53, %v56
    %vm62 = vcmp.ge.f32.partialorder %v58, 0.0
    %vm63 = vcmp.ge.f32.partialorder %v59, 0.0
    %vm64 = vcmp.ge.f32.partialorder %v60, 0.0
    %vm65 = vcmp.ge.f32.partialorder %v61, 0.0
    %v66 = vmul.f32 %v58, 0.01
    %v67 = vmul.f32 %v59, 0.01
    %v68 = vmul.f32 %v60, 0.01
    %v69 = vmul.f32 %v61, 0.01
    %v70 = vsel %vm62, %v58, %v66
    %v71 = vsel %vm63, %v59, %v67
    %v72 = vsel %vm64, %v60, %v68
    %v73 = vsel %vm65, %v61, %v69
    %v74 = vld [vmem:[%s1] sm:$0xff]
    %v75 = vld [vmem:[%s1 + $0x8] sm:$0xff]
    %v76 = vld [vmem:[%s1 + $0x10] sm:$0xff]
    %v77 = vld [vmem:[%s1 + $0x18] sm:$0xff]
    %v78 = vlaneseq
    %v79 = vshrl.u32 %v78, 7
    %v80 = vadd.s32 %v79, 8
    %v81 = vadd.s32 %v79, 16
    %v82 = vadd.s32 %v79, 24
    %vm83 = vcmp.ne.s32.totalorder %v79, 15
    %vm84 = vcmp.ne.s32.totalorder %v80, 15
    %vm85 = vcmp.ne.s32.totalorder %v81, 15
    %vm86 = vcmp.ne.s32.totalorder %v82, 15
    %vm87 = vcmp.ne.s32.totalorder %v79, 31
    %vm88 = vcmp.ne.s32.totalorder %v80, 31
    %vm89 = vcmp.ne.s32.totalorder %v81, 31
    %vm90 = vcmp.ne.s32.totalorder %v82, 31
    %vm91 = vmand %vm83, %vm87
    %vm92 = vmand %vm84, %vm88
    %vm93 = vmand %vm85, %vm89
    %vm94 = vmand %vm86, %vm90
    %v95 = vrot.slane %v70, 1
    %v96 = vrot.slane %v71, 1
    %v97 = vrot.slane %v72, 1
    %v98 = vrot.slane %v73, 1
    %vm99 = vcmp.lt.s32.totalorder %v79, 7
    %v100 = vsel %vm99, %v97, %v98
    %v101 = vsel %vm99, %v96, %v97
    %v102 = vsel %vm99, %v95, %v96
    %v103 = vsel %vm99, %v98, %v95
    %v104 = vsel %vm91, 1, 0
    %v105 = vsel %vm92, 1, 0
    %v106 = vsel %vm93, 1, 0
    %v107 = vsel %vm94, 1, 0
    %vm108 = vcmp.eq.s32.totalorder %v104, 1
    %vm109 = vcmp.eq.s32.totalorder %v105, 1
    %vm110 = vcmp.eq.s32.totalorder %v106, 1
    %vm111 = vcmp.eq.s32.totalorder %v107, 1
    %v112 = vsel %vm108, %v102, 0.0
    %v113 = vsel %vm109, %v101, 0.0
    %v114 = vsel %vm110, %v100, 0.0
    %v115 = vsel %vm111, %v103, 0.0
    %v116 = vrot.slane %v74, 1
    %v117 = vrot.slane %v75, 1
    %v118 = vrot.slane %v76, 1
    %v119 = vrot.slane %v77, 1
    %v120 = vsel %vm99, %v118, %v119
    %v121 = vsel %vm99, %v117, %v118
    %v122 = vsel %vm99, %v116, %v117
    %v123 = vsel %vm99, %v119, %v116
    %v124 = vsel %vm108, %v122, 0.0
    %v125 = vsel %vm109, %v121, 0.0
    %v126 = vsel %vm110, %v120, 0.0
    %v127 = vsel %vm111, %v123, 0.0
    %v128 = vld [vmem:[%s6] sm:$0x3]
    %133 = vrot.lane.b32.xlu0 %v112, 64
    %v134 = vpop.permute.xlu0 %133
    %135 = vrot.lane.b32.xlu0 %v113, 64
    %v136 = vpop.permute.xlu0 %135
    %137 = vrot.lane.b32.xlu0 %v114, 64
    %v138 = vpop.permute.xlu0 %137
    %139 = vrot.lane.b32.xlu0 %v115, 64
    %v140 = vpop.permute.xlu0 %139
    %149 = vrot.lane.b32.xlu0 %v124, 64
    %v150 = vpop.permute.xlu0 %149
    %151 = vrot.lane.b32.xlu0 %v125, 64
    %v152 = vpop.permute.xlu0 %151
    %153 = vrot.lane.b32.xlu0 %v126, 64
    %v154 = vpop.permute.xlu0 %153
    %155 = vrot.lane.b32.xlu0 %v127, 64
    %v156 = vpop.permute.xlu0 %155
    %vm161 = vcmask 523264
    %v162 = vsel %vm161, %v74, %v134
    %v163 = vsel %vm161, %v75, %v136
    %v164 = vsel %vm161, %v76, %v138
    %v165 = vsel %vm161, %v77, %v140
    %v166 = vsel %vm161, %v134, %v150
    %v167 = vsel %vm161, %v136, %v152
    %v168 = vsel %vm161, %v138, %v154
    %v169 = vsel %vm161, %v140, %v156
    %v170 = vld [vmem:[#allocation2] sm:$0xff]
    %v171 = vld [vmem:[#allocation2 + $0x8] sm:$0xff]
    %v172 = vld [vmem:[#allocation2 + $0x10] sm:$0xff]
    %v173 = vld [vmem:[#allocation2 + $0x18] sm:$0xff]
    %v174 = vld [vmem:[#allocation2 + $0x20] sm:$0xff]
    %v175 = vld [vmem:[#allocation2 + $0x28] sm:$0xff]
    %v176 = vld [vmem:[#allocation2 + $0x30] sm:$0xff]
    %v177 = vld [vmem:[#allocation2 + $0x38] sm:$0xff]
    %v178 = vld [vmem:[#allocation2 + $0x40] sm:$0xff]
    %v179 = vld [vmem:[#allocation2 + $0x48] sm:$0xff]
    %v180 = vld [vmem:[#allocation2 + $0x50] sm:$0xff]
    %v181 = vld [vmem:[#allocation2 + $0x58] sm:$0xff]
    %v182 = vld [vmem:[#allocation2 + $0x60] sm:$0xff]
    %v183 = vld [vmem:[#allocation2 + $0x68] sm:$0xff]
    %v184 = vld [vmem:[#allocation2 + $0x70] sm:$0xff]
    %v185 = vld [vmem:[#allocation2 + $0x78] sm:$0xff]
    %v186 = vld [vmem:[#allocation2 + $0x80] sm:$0xff]
    %v187 = vld [vmem:[#allocation2 + $0x88] sm:$0xff]
    %v188 = vld [vmem:[#allocation2 + $0x90] sm:$0xff]
    %v189 = vld [vmem:[#allocation2 + $0x98] sm:$0xff]
    %v190 = vld [vmem:[#allocation2 + $0xa0] sm:$0xff]
    %v191 = vld [vmem:[#allocation2 + $0xa8] sm:$0xff]
    %v192 = vld [vmem:[#allocation2 + $0xb0] sm:$0xff]
    %v193 = vld [vmem:[#allocation2 + $0xb8] sm:$0xff]
    %v194 = vld [vmem:[#allocation2 + $0xc0] sm:$0xff]
    %v195 = vld [vmem:[#allocation2 + $0xc8] sm:$0xff]
    %v196 = vld [vmem:[#allocation2 + $0xd0] sm:$0xff]
    %v197 = vld [vmem:[#allocation2 + $0xd8] sm:$0xff]
    %v198 = vld [vmem:[#allocation2 + $0xe0] sm:$0xff]
    %v199 = vld [vmem:[#allocation2 + $0xe8] sm:$0xff]
    %v200 = vld [vmem:[#allocation2 + $0xf0] sm:$0xff]
    %v201 = vld [vmem:[#allocation2 + $0xf8] sm:$0xff]
    %v202 = vld [vmem:[#allocation2 + $0x100] sm:$0xff]
    %v203 = vld [vmem:[#allocation2 + $0x108] sm:$0xff]
    %v204 = vld [vmem:[#allocation2 + $0x110] sm:$0xff]
    %v205 = vld [vmem:[#allocation2 + $0x118] sm:$0xff]
    %v206 = vld [vmem:[#allocation2 + $0x120] sm:$0xff]
    %v207 = vld [vmem:[#allocation2 + $0x128] sm:$0xff]
    %v208 = vld [vmem:[#allocation2 + $0x130] sm:$0xff]
    %v209 = vld [vmem:[#allocation2 + $0x138] sm:$0xff]
    %v210 = vld [vmem:[#allocation2 + $0x140] sm:$0xff]
    %v211 = vld [vmem:[#allocation2 + $0x148] sm:$0xff]
    %v212 = vld [vmem:[#allocation2 + $0x150] sm:$0xff]
    %v213 = vld [vmem:[#allocation2 + $0x158] sm:$0xff]
    %v214 = vld [vmem:[#allocation2 + $0x160] sm:$0xff]
    %v215 = vld [vmem:[#allocation2 + $0x168] sm:$0xff]
    %v216 = vld [vmem:[#allocation2 + $0x170] sm:$0xff]
    %v217 = vld [vmem:[#allocation2 + $0x178] sm:$0xff]
    %v219 = vperm.slane %v128, 0
    %v220 = vperm.slane %v128, 1
    %v224 = vsel %vm161, %v74, 0
    %v227 = vsel %vm161, %v75, 0
    %v230 = vsel %vm161, %v76, 0
    %v233 = vsel %vm161, %v77, 0
    %235 = vmatpush.msra.mxu0 %v200
    %236 = vmatpush.msra.mxu0 %v198
    %237 = vmatpush.msra.mxu0 %v196
    %238 = vmatpush.msra.mxu0 %v194
    %239 = vmatpush.msra.mxu0 %v192
    %240 = vmatpush.msra.mxu0 %v190
    %241 = vmatpush.msra.mxu0 %v188
    %242 = vmatpush.msra.mxu0 %v186
    %243 = vmatpush.msra.mxu0 %v184
    %244 = vmatpush.msra.mxu0 %v182
    %245 = vmatpush.msra.mxu0 %v180
    %246 = vmatpush.msra.mxu0 %v178
    %247 = vmatpush.msra.mxu0 %v176
    %248 = vmatpush.msra.mxu0 %v174
    %249 = vmatpush.msra.mxu0 %v172
    %250 = vmatpush.msra.mxu0 %v170
    %251 = vmatmul.f32.gmra.mxu0 %v70
    %v252 = vpop.f32.mrf.mxu0
    %v253 = vadd.f32 %v219, %v252
    %254 = vmatmul.f32.gmra.mxu0 %v71
    %v255 = vpop.f32.mrf.mxu0
    %v256 = vadd.f32 %v219, %v255
    %257 = vmatmul.f32.gmra.mxu0 %v72
    %v258 = vpop.f32.mrf.mxu0
    %v259 = vadd.f32 %v219, %v258
    %260 = vmatmul.f32.gmra.mxu0 %v73
    %v261 = vpop.f32.mrf.mxu0
    %v262 = vadd.f32 %v219, %v261
    %263 = vdwg.mxu0
    %264 = vmatpush.msra.mxu0 0.0
    %265 = vmatpush.msra.mxu0 0.0
    %266 = vmatpush.msra.mxu0 0.0
    %267 = vmatpush.msra.mxu0 0.0
    %268 = vmatpush.msra.mxu0 0.0
    %269 = vmatpush.msra.mxu0 0.0
    %270 = vmatpush.msra.mxu0 0.0
    %271 = vmatpush.msra.mxu0 0.0
    %272 = vmatpush.msra.mxu0 %v216
    %273 = vmatpush.msra.mxu0 %v214
    %274 = vmatpush.msra.mxu0 %v212
    %275 = vmatpush.msra.mxu0 %v210
    %276 = vmatpush.msra.mxu0 %v208
    %277 = vmatpush.msra.mxu0 %v206
    %278 = vmatpush.msra.mxu0 %v204
    %279 = vmatpush.msra.mxu0 %v202
    %280 = vmatmul.f32.gmra.mxu0 %v224
    %v281 = vpop.f32.mrf.mxu0
    %v282 = vadd.f32 %v253, %v281
    %283 = vmatmul.f32.gmra.mxu0 %v227
    %v284 = vpop.f32.mrf.mxu0
    %v285 = vadd.f32 %v256, %v284
    %286 = vmatmul.f32.gmra.mxu0 %v230
    %v287 = vpop.f32.mrf.mxu0
    %v288 = vadd.f32 %v259, %v287
    %289 = vmatmul.f32.gmra.mxu0 %v233
    %v290 = vpop.f32.mrf.mxu0
    %v291 = vadd.f32 %v262, %v290
    %292 = vdwg.mxu0
    %293 = vmatpush.msra.mxu0 %v201
    %294 = vmatpush.msra.mxu0 %v199
    %295 = vmatpush.msra.mxu0 %v197
    %296 = vmatpush.msra.mxu0 %v195
    %297 = vmatpush.msra.mxu0 %v193
    %298 = vmatpush.msra.mxu0 %v191
    %299 = vmatpush.msra.mxu0 %v189
    %300 = vmatpush.msra.mxu0 %v187
    %301 = vmatpush.msra.mxu0 %v185
    %302 = vmatpush.msra.mxu0 %v183
    %303 = vmatpush.msra.mxu0 %v181
    %304 = vmatpush.msra.mxu0 %v179
    %305 = vmatpush.msra.mxu0 %v177
    %306 = vmatpush.msra.mxu0 %v175
    %307 = vmatpush.msra.mxu0 %v173
    %308 = vmatpush.msra.mxu0 %v171
    %309 = vmatmul.f32.gmra.mxu0 %v70
    %v310 = vpop.f32.mrf.mxu0
    %v311 = vadd.f32 %v220, %v310
    %312 = vmatmul.f32.gmra.mxu0 %v71
    %v313 = vpop.f32.mrf.mxu0
    %v314 = vadd.f32 %v220, %v313
    %315 = vmatmul.f32.gmra.mxu0 %v72
    %v316 = vpop.f32.mrf.mxu0
    %v317 = vadd.f32 %v220, %v316
    %318 = vmatmul.f32.gmra.mxu0 %v73
    %v319 = vpop.f32.mrf.mxu0
    %v320 = vadd.f32 %v220, %v319
    %321 = vdwg.mxu0
    %322 = vmatpush.msra.mxu0 0.0
    %323 = vmatpush.msra.mxu0 0.0
    %324 = vmatpush.msra.mxu0 0.0
    %325 = vmatpush.msra.mxu0 0.0
    %326 = vmatpush.msra.mxu0 0.0
    %327 = vmatpush.msra.mxu0 0.0
    %328 = vmatpush.msra.mxu0 0.0
    %329 = vmatpush.msra.mxu0 0.0
    %330 = vmatpush.msra.mxu0 %v217
    %331 = vmatpush.msra.mxu0 %v215
    %332 = vmatpush.msra.mxu0 %v213
    %333 = vmatpush.msra.mxu0 %v211
    %334 = vmatpush.msra.mxu0 %v209
    %335 = vmatpush.msra.mxu0 %v207
    %336 = vmatpush.msra.mxu0 %v205
    %337 = vmatpush.msra.mxu0 %v203
    %338 = vmatmul.f32.gmra.mxu0 %v224
    %v339 = vpop.f32.mrf.mxu0
    %v340 = vadd.f32 %v311, %v339
    %341 = vmatmul.f32.gmra.mxu0 %v227
    %v342 = vpop.f32.mrf.mxu0
    %v343 = vadd.f32 %v314, %v342
    %344 = vmatmul.f32.gmra.mxu0 %v230
    %v345 = vpop.f32.mrf.mxu0
    %v346 = vadd.f32 %v317, %v345
    %347 = vmatmul.f32.gmra.mxu0 %v233
    %v348 = vpop.f32.mrf.mxu0
    %v349 = vadd.f32 %v320, %v348
    %350 = vdwg.mxu0
    %v351 = vld [vmem:[%s5] sm:$0xff]
    %v352 = vld [vmem:[%s5 + $0x8] sm:$0xff]
    %v353 = vld [vmem:[%s5 + $0x10] sm:$0xff]
    %v354 = vld [vmem:[%s5 + $0x18] sm:$0xff]
    %v355 = vld [vmem:[%s5 + $0x20] sm:$0xff]
    %v356 = vld [vmem:[%s5 + $0x28] sm:$0xff]
    %v357 = vld [vmem:[%s5 + $0x30] sm:$0xff]
    %v358 = vld [vmem:[%s5 + $0x38] sm:$0xff]
    %v359 = vld [vmem:[%s5 + $0x40] sm:$0xff]
    %v360 = vld [vmem:[%s5 + $0x48] sm:$0xff]
    %v361 = vld [vmem:[%s5 + $0x50] sm:$0xff]
    %v362 = vld [vmem:[%s5 + $0x58] sm:$0xff]
    %v363 = vld [vmem:[%s5 + $0x60] sm:$0xff]
    %v364 = vld [vmem:[%s5 + $0x68] sm:$0xff]
    %v365 = vld [vmem:[%s5 + $0x70] sm:$0xff]
    %v366 = vld [vmem:[%s5 + $0x78] sm:$0xff]
    %v367 = vld [vmem:[%s5 + $0x80] sm:$0xff]
    %v368 = vld [vmem:[%s5 + $0x88] sm:$0xff]
    %v369 = vld [vmem:[%s5 + $0x90] sm:$0xff]
    %v370 = vld [vmem:[%s5 + $0x98] sm:$0xff]
    %v371 = vld [vmem:[%s5 + $0xa0] sm:$0xff]
    %v372 = vld [vmem:[%s5 + $0xa8] sm:$0xff]
    %v373 = vld [vmem:[%s5 + $0xb0] sm:$0xff]
    %v374 = vld [vmem:[%s5 + $0xb8] sm:$0xff]
    %v375 = vld [vmem:[%s5 + $0xc0] sm:$0xff]
    %v376 = vld [vmem:[%s5 + $0xc8] sm:$0xff]
    %v377 = vld [vmem:[%s5 + $0xd0] sm:$0xff]
    %v378 = vld [vmem:[%s5 + $0xd8] sm:$0xff]
    %v379 = vld [vmem:[%s5 + $0xe0] sm:$0xff]
    %v380 = vld [vmem:[%s5 + $0xe8] sm:$0xff]
    %v381 = vld [vmem:[%s5 + $0xf0] sm:$0xff]
    %v382 = vld [vmem:[%s5 + $0xf8] sm:$0xff]
    %v383 = vld [vmem:[%s5 + $0x100] sm:$0xff]
    %v384 = vld [vmem:[%s5 + $0x108] sm:$0xff]
    %v385 = vld [vmem:[%s5 + $0x110] sm:$0xff]
    %v386 = vld [vmem:[%s5 + $0x118] sm:$0xff]
    %v387 = vld [vmem:[%s5 + $0x120] sm:$0xff]
    %v388 = vld [vmem:[%s5 + $0x128] sm:$0xff]
    %v389 = vld [vmem:[%s5 + $0x130] sm:$0xff]
    %v390 = vld [vmem:[%s5 + $0x138] sm:$0xff]
    %v391 = vld [vmem:[%s5 + $0x140] sm:$0xff]
    %v392 = vld [vmem:[%s5 + $0x148] sm:$0xff]
    %v393 = vld [vmem:[%s5 + $0x150] sm:$0xff]
    %v394 = vld [vmem:[%s5 + $0x158] sm:$0xff]
    %v395 = vld [vmem:[%s5 + $0x160] sm:$0xff]
    %v396 = vld [vmem:[%s5 + $0x168] sm:$0xff]
    %v397 = vld [vmem:[%s5 + $0x170] sm:$0xff]
    %v398 = vld [vmem:[%s5 + $0x178] sm:$0xff]
    %v399 = vld [vmem:[%s5 + $0x180] sm:$0xff]
    %v400 = vld [vmem:[%s5 + $0x188] sm:$0xff]
    %v401 = vld [vmem:[%s5 + $0x190] sm:$0xff]
    %v402 = vld [vmem:[%s5 + $0x198] sm:$0xff]
    %v403 = vld [vmem:[%s5 + $0x1a0] sm:$0xff]
    %v404 = vld [vmem:[%s5 + $0x1a8] sm:$0xff]
    %v405 = vld [vmem:[%s5 + $0x1b0] sm:$0xff]
    %v406 = vld [vmem:[%s5 + $0x1b8] sm:$0xff]
    %v407 = vld [vmem:[%s5 + $0x1c0] sm:$0xff]
    %v408 = vld [vmem:[%s5 + $0x1c8] sm:$0xff]
    %v409 = vld [vmem:[%s5 + $0x1d0] sm:$0xff]
    %v410 = vld [vmem:[%s5 + $0x1d8] sm:$0xff]
    %v411 = vld [vmem:[%s5 + $0x1e0] sm:$0xff]
    %v412 = vld [vmem:[%s5 + $0x1e8] sm:$0xff]
    %v413 = vld [vmem:[%s5 + $0x1f0] sm:$0xff]
    %v414 = vld [vmem:[%s5 + $0x1f8] sm:$0xff]
    %v415 = vld [vmem:[%s5 + $0x200] sm:$0xff]
    %v416 = vld [vmem:[%s5 + $0x208] sm:$0xff]
    %v417 = vld [vmem:[%s5 + $0x210] sm:$0xff]
    %v418 = vld [vmem:[%s5 + $0x218] sm:$0xff]
    %v419 = vld [vmem:[%s5 + $0x220] sm:$0xff]
    %v420 = vld [vmem:[%s5 + $0x228] sm:$0xff]
    %v421 = vld [vmem:[%s5 + $0x230] sm:$0xff]
    %v422 = vld [vmem:[%s5 + $0x238] sm:$0xff]
    %v423 = vld [vmem:[%s5 + $0x240] sm:$0xff]
    %v424 = vld [vmem:[%s5 + $0x248] sm:$0xff]
    %v425 = vld [vmem:[%s5 + $0x250] sm:$0xff]
    %v426 = vld [vmem:[%s5 + $0x258] sm:$0xff]
    %v427 = vld [vmem:[%s5 + $0x260] sm:$0xff]
    %v428 = vld [vmem:[%s5 + $0x268] sm:$0xff]
    %v429 = vld [vmem:[%s5 + $0x270] sm:$0xff]
    %v430 = vld [vmem:[%s5 + $0x278] sm:$0xff]
    %v431 = vld [vmem:[%s5 + $0x280] sm:$0xff]
    %v432 = vld [vmem:[%s5 + $0x288] sm:$0xff]
    %v433 = vld [vmem:[%s5 + $0x290] sm:$0xff]
    %v434 = vld [vmem:[%s5 + $0x298] sm:$0xff]
    %v435 = vld [vmem:[%s5 + $0x2a0] sm:$0xff]
    %v436 = vld [vmem:[%s5 + $0x2a8] sm:$0xff]
    %v437 = vld [vmem:[%s5 + $0x2b0] sm:$0xff]
    %v438 = vld [vmem:[%s5 + $0x2b8] sm:$0xff]
    %v439 = vld [vmem:[%s5 + $0x2c0] sm:$0xff]
    %v440 = vld [vmem:[%s5 + $0x2c8] sm:$0xff]
    %v441 = vld [vmem:[%s5 + $0x2d0] sm:$0xff]
    %v442 = vld [vmem:[%s5 + $0x2d8] sm:$0xff]
    %v443 = vld [vmem:[%s5 + $0x2e0] sm:$0xff]
    %v444 = vld [vmem:[%s5 + $0x2e8] sm:$0xff]
    %v445 = vld [vmem:[%s5 + $0x2f0] sm:$0xff]
    %v446 = vld [vmem:[%s5 + $0x2f8] sm:$0xff]
    %447 = vmatpush.msra.mxu0 %v381
    %448 = vmatpush.msra.mxu0 %v379
    %449 = vmatpush.msra.mxu0 %v377
    %450 = vmatpush.msra.mxu0 %v375
    %451 = vmatpush.msra.mxu0 %v373
    %452 = vmatpush.msra.mxu0 %v371
    %453 = vmatpush.msra.mxu0 %v369
    %454 = vmatpush.msra.mxu0 %v367
    %455 = vmatpush.msra.mxu0 %v365
    %456 = vmatpush.msra.mxu0 %v363
    %457 = vmatpush.msra.mxu0 %v361
    %458 = vmatpush.msra.mxu0 %v359
    %459 = vmatpush.msra.mxu0 %v357
    %460 = vmatpush.msra.mxu0 %v355
    %461 = vmatpush.msra.mxu0 %v353
    %462 = vmatpush.msra.mxu0 %v351
    %463 = vmatmul.f32.gmra.mxu0 %v70
    %v464 = vpop.f32.mrf.mxu0
    %v465 = vadd.f32 %v219, %v464
    %466 = vmatmul.f32.gmra.mxu0 %v71
    %v467 = vpop.f32.mrf.mxu0
    %v468 = vadd.f32 %v219, %v467
    %469 = vmatmul.f32.gmra.mxu0 %v72
    %v470 = vpop.f32.mrf.mxu0
    %v471 = vadd.f32 %v219, %v470
    %472 = vmatmul.f32.gmra.mxu0 %v73
    %v473 = vpop.f32.mrf.mxu0
    %v474 = vadd.f32 %v219, %v473
    %475 = vdwg.mxu0
    %476 = vmatpush.msra.mxu0 %v413
    %477 = vmatpush.msra.mxu0 %v411
    %478 = vmatpush.msra.mxu0 %v409
    %479 = vmatpush.msra.mxu0 %v407
    %480 = vmatpush.msra.mxu0 %v405
    %481 = vmatpush.msra.mxu0 %v403
    %482 = vmatpush.msra.mxu0 %v401
    %483 = vmatpush.msra.mxu0 %v399
    %484 = vmatpush.msra.mxu0 %v397
    %485 = vmatpush.msra.mxu0 %v395
    %486 = vmatpush.msra.mxu0 %v393
    %487 = vmatpush.msra.mxu0 %v391
    %488 = vmatpush.msra.mxu0 %v389
    %489 = vmatpush.msra.mxu0 %v387
    %490 = vmatpush.msra.mxu0 %v385
    %491 = vmatpush.msra.mxu0 %v383
    %492 = vmatmul.f32.gmra.mxu0 %v162
    %v493 = vpop.f32.mrf.mxu0
    %v494 = vadd.f32 %v465, %v493
    %495 = vmatmul.f32.gmra.mxu0 %v163
    %v496 = vpop.f32.mrf.mxu0
    %v497 = vadd.f32 %v468, %v496
    %498 = vmatmul.f32.gmra.mxu0 %v164
    %v499 = vpop.f32.mrf.mxu0
    %v500 = vadd.f32 %v471, %v499
    %501 = vmatmul.f32.gmra.mxu0 %v165
    %v502 = vpop.f32.mrf.mxu0
    %v503 = vadd.f32 %v474, %v502
    %504 = vdwg.mxu0
    %505 = vmatpush.msra.mxu0 %v445
    %506 = vmatpush.msra.mxu0 %v443
    %507 = vmatpush.msra.mxu0 %v441
    %508 = vmatpush.msra.mxu0 %v439
    %509 = vmatpush.msra.mxu0 %v437
    %510 = vmatpush.msra.mxu0 %v435
    %511 = vmatpush.msra.mxu0 %v433
    %512 = vmatpush.msra.mxu0 %v431
    %513 = vmatpush.msra.mxu0 %v429
    %514 = vmatpush.msra.mxu0 %v427
    %515 = vmatpush.msra.mxu0 %v425
    %516 = vmatpush.msra.mxu0 %v423
    %517 = vmatpush.msra.mxu0 %v421
    %518 = vmatpush.msra.mxu0 %v419
    %519 = vmatpush.msra.mxu0 %v417
    %520 = vmatpush.msra.mxu0 %v415
    %521 = vmatmul.f32.gmra.mxu0 %v166
    %v522 = vpop.f32.mrf.mxu0
    %v523 = vadd.f32 %v494, %v522
    %524 = vmatmul.f32.gmra.mxu0 %v167
    %v525 = vpop.f32.mrf.mxu0
    %v526 = vadd.f32 %v497, %v525
    %527 = vmatmul.f32.gmra.mxu0 %v168
    %v528 = vpop.f32.mrf.mxu0
    %v529 = vadd.f32 %v500, %v528
    %530 = vmatmul.f32.gmra.mxu0 %v169
    %v531 = vpop.f32.mrf.mxu0
    %v532 = vadd.f32 %v503, %v531
    %533 = vdwg.mxu0
    %534 = vmatpush.msra.mxu0 %v382
    %535 = vmatpush.msra.mxu0 %v380
    %536 = vmatpush.msra.mxu0 %v378
    %537 = vmatpush.msra.mxu0 %v376
    %538 = vmatpush.msra.mxu0 %v374
    %539 = vmatpush.msra.mxu0 %v372
    %540 = vmatpush.msra.mxu0 %v370
    %541 = vmatpush.msra.mxu0 %v368
    %542 = vmatpush.msra.mxu0 %v366
    %543 = vmatpush.msra.mxu0 %v364
    %544 = vmatpush.msra.mxu0 %v362
    %545 = vmatpush.msra.mxu0 %v360
    %546 = vmatpush.msra.mxu0 %v358
    %547 = vmatpush.msra.mxu0 %v356
    %548 = vmatpush.msra.mxu0 %v354
    %549 = vmatpush.msra.mxu0 %v352
    %550 = vmatmul.f32.gmra.mxu0 %v70
    %v551 = vpop.f32.mrf.mxu0
    %v552 = vadd.f32 %v220, %v551
    %553 = vmatmul.f32.gmra.mxu0 %v71
    %v554 = vpop.f32.mrf.mxu0
    %v555 = vadd.f32 %v220, %v554
    %556 = vmatmul.f32.gmra.mxu0 %v72
    %v557 = vpop.f32.mrf.mxu0
    %v558 = vadd.f32 %v220, %v557
    %559 = vmatmul.f32.gmra.mxu0 %v73
    %v560 = vpop.f32.mrf.mxu0
    %v561 = vadd.f32 %v220, %v560
    %562 = vdwg.mxu0
    %563 = vmatpush.msra.mxu0 %v414
    %564 = vmatpush.msra.mxu0 %v412
    %565 = vmatpush.msra.mxu0 %v410
    %566 = vmatpush.msra.mxu0 %v408
    %567 = vmatpush.msra.mxu0 %v406
    %568 = vmatpush.msra.mxu0 %v404
    %569 = vmatpush.msra.mxu0 %v402
    %570 = vmatpush.msra.mxu0 %v400
    %571 = vmatpush.msra.mxu0 %v398
    %572 = vmatpush.msra.mxu0 %v396
    %573 = vmatpush.msra.mxu0 %v394
    %574 = vmatpush.msra.mxu0 %v392
    %575 = vmatpush.msra.mxu0 %v390
    %576 = vmatpush.msra.mxu0 %v388
    %577 = vmatpush.msra.mxu0 %v386
    %578 = vmatpush.msra.mxu0 %v384
    %579 = vmatmul.f32.gmra.mxu0 %v162
    %v580 = vpop.f32.mrf.mxu0
    %v581 = vadd.f32 %v552, %v580
    %582 = vmatmul.f32.gmra.mxu0 %v163
    %v583 = vpop.f32.mrf.mxu0
    %v584 = vadd.f32 %v555, %v583
    %585 = vmatmul.f32.gmra.mxu0 %v164
    %v586 = vpop.f32.mrf.mxu0
    %v587 = vadd.f32 %v558, %v586
    %588 = vmatmul.f32.gmra.mxu0 %v165
    %v589 = vpop.f32.mrf.mxu0
    %v590 = vadd.f32 %v561, %v589
    %591 = vdwg.mxu0
    %592 = vmatpush.msra.mxu0 %v446
    %593 = vmatpush.msra.mxu0 %v444
    %594 = vmatpush.msra.mxu0 %v442
    %595 = vmatpush.msra.mxu0 %v440
    %596 = vmatpush.msra.mxu0 %v438
    %597 = vmatpush.msra.mxu0 %v436
    %598 = vmatpush.msra.mxu0 %v434
    %599 = vmatpush.msra.mxu0 %v432
    %600 = vmatpush.msra.mxu0 %v430
    %601 = vmatpush.msra.mxu0 %v428
    %602 = vmatpush.msra.mxu0 %v426
    %603 = vmatpush.msra.mxu0 %v424
    %604 = vmatpush.msra.mxu0 %v422
    %605 = vmatpush.msra.mxu0 %v420
    %606 = vmatpush.msra.mxu0 %v418
    %607 = vmatpush.msra.mxu0 %v416
    %608 = vmatmul.f32.gmra.mxu0 %v166
    %v609 = vpop.f32.mrf.mxu0
    %v610 = vadd.f32 %v581, %v609
    %611 = vmatmul.f32.gmra.mxu0 %v167
    %v612 = vpop.f32.mrf.mxu0
    %v613 = vadd.f32 %v584, %v612
    %614 = vmatmul.f32.gmra.mxu0 %v168
    %v615 = vpop.f32.mrf.mxu0
    %v616 = vadd.f32 %v587, %v615
    %617 = vmatmul.f32.gmra.mxu0 %v169
    %v618 = vpop.f32.mrf.mxu0
    %v619 = vadd.f32 %v590, %v618
    %620 = vdwg.mxu0
    %621 = vst [vmem:[%s7] sm:$0xff] %v282
    %622 = vst [vmem:[%s7 + $0x8] sm:$0xff] %v340
    %623 = vst [vmem:[%s7 + $0x10] sm:$0xff] %v285
    %624 = vst [vmem:[%s7 + $0x18] sm:$0xff] %v343
    %625 = vst [vmem:[%s7 + $0x40] sm:$0xff] %v288
    %626 = vst [vmem:[%s7 + $0x48] sm:$0xff] %v346
    %627 = vst [vmem:[%s7 + $0x50] sm:$0xff] %v291
    %628 = vst [vmem:[%s7 + $0x58] sm:$0xff] %v349
    %s629 = scalar_lea.vmem %s7, 32
    %630 = vst [vmem:[%s629] sm:$0xff] %v523
    %631 = vst [vmem:[%s629 + $0x8] sm:$0xff] %v610
    %632 = vst [vmem:[%s629 + $0x10] sm:$0xff] %v526
    %633 = vst [vmem:[%s629 + $0x18] sm:$0xff] %v613
    %634 = vst [vmem:[%s629 + $0x40] sm:$0xff] %v529
    %635 = vst [vmem:[%s629 + $0x48] sm:$0xff] %v616
    %636 = vst [vmem:[%s629 + $0x50] sm:$0xff] %v532
    %637 = vst [vmem:[%s629 + $0x58] sm:$0xff] %v619
    // Predicated region
    $region34: #{res_block_decoder.3} parent=1 // pred_check
      _
    $region35: #{res_block_decoder.3} parent=1 // pred_check_branch
      %639 = sbr.rel (0) target = $region37
    $region36: #{res_block_decoder.3} parent=1 // pred_region
      _
    $region37: #{res_block_decoder.3} parent=1 // pred_fallthru
      _
    // Predicated region
    $region38: #{res_block_decoder.3} parent=1 // pred_check
      _
    $region39: #{res_block_decoder.3} parent=1 // pred_check_branch
      %641 = sbr.rel (0) target = $region41
    $region40: #{res_block_decoder.3} parent=1 // pred_region
      _
    $region41: #{res_block_decoder.3} parent=1 // pred_fallthru
      _
    %642 = vsyncpa [#allocation3], 1

</llo_original>
